<compile_context>
chip_gen: v6e
topology: v6e:2x2x1
jax: 0.10.0
libtpu: 0.0.40
codegen_flags: <defaults>
</compile_context>

<pallas_src>
import functools

import jax
import jax.numpy as jnp
from jax import lax
from jax.experimental import pallas as pl
from jax.experimental.pallas import tpu as pltpu


def _conv_tile(x_ref, xh_ref, w_ref, *, td, H, W, Cin):
    """Polyphase transposed-conv tile as one fused im2col bf16 MXU matmul.

    x_ref:  (1, td, H+1, (W+1)*Cin) bf16  lane-dense packed tile (d rows i*td..i*td+td-1)
    xh_ref: (1, 1,  H+1, (W+1)*Cin) bf16  1-row D halo (d row (i+1)*td; zeros past D-1)
    w_ref:  (8*Cin, 8*Cout)         bf16  rows=(od,oh,ow,cin), cols=(pd,ph,pw,cout)
    returns (td*H*W, 8*Cout) f32
    """
    H1, W1 = H + 1, W + 1
    xt = jnp.concatenate([x_ref[0], xh_ref[0]], axis=0)      # (td+1, H1, W1*Cin)
    x4 = xt.reshape(td + 1, H1, W1, Cin)                     # single (w,cin) lane split
    slabs = []
    for od in range(2):
        for oh in range(2):
            for ow in range(2):
                slabs.append(x4[od:od + td, oh:oh + H, ow:ow + W, :])   # (td,H,W,Cin)
    patch = jnp.concatenate(slabs, axis=-1)                  # (td, H, W, 8*Cin)
    patch = patch.reshape(td * H * W, 8 * Cin)               # (M, 8*Cin) bf16
    return jnp.dot(patch, w_ref[...], preferred_element_type=jnp.float32)


def _stats_kernel(x_ref, xh_ref, w_ref, sum_ref, sq_ref, *, td, H, W, Cin):
    """Per-(batch, d-tile) channel sum / sum-of-squares of the conv output (for BN)."""
    # TODO(synk): on v5e (128-wide, 197 TF/s MXU) the full recompute for stats may become
    # MXU-bound; profile and cheapen this pass if so (v6e/v7x are HBM-bound here).
    y = _conv_tile(x_ref, xh_ref, w_ref, td=td, H=H, W=W, Cin=Cin)
    sum_ref[0, 0] = jnp.sum(y, axis=0, keepdims=True)
    sq_ref[0, 0] = jnp.sum(y * y, axis=0, keepdims=True)


def _deconv_bn_act_kernel(x_ref, xh_ref, w_ref, scale_ref, shift_ref, o_ref,
                          *, td, H, W, Cin, slope):
    """Recompute the conv tile, fuse BN affine + LeakyReLU, store bf16."""
    y = _conv_tile(x_ref, xh_ref, w_ref, td=td, H=H, W=W, Cin=Cin)   # (M, 8*Cout) f32
    z = y * scale_ref[...] + shift_ref[...]
    o_ref[0] = jnp.where(z > 0, z, slope * z).astype(o_ref.dtype)


def _vmem_limit_bytes():
    # v5e/v6e: 128 MiB physical -> ~96 MiB scoped; v7x: 64 MiB physical -> 48 MiB.
    try:
        cap = int(pltpu.get_tpu_info().vmem_capacity_bytes)
    except Exception:
        cap = 64 * 1024 * 1024
    return int(min((cap * 3) // 4, 100 * 1024 * 1024))


def deconv_bn_relu_3d(x, weight, gamma, beta, *, stride=2, pad=1, out_pad=1,
                      eps=1e-5, slope=0.01, block_d=None):
    """x: (B, Cin, D, H, W) NCDHW; weight: (Cin, Cout, K, K, K) (ConvTranspose3d layout).

    Returns NCDHW output in bf16 (the 8x-upsampled store is kept bf16 end-to-end).
    """
    B, Cin, D, H, W = x.shape
    Cin_w, Cout, K, K2, K3 = weight.shape
    assert Cin == Cin_w and K == K2 == K3
    # TODO(synk): generalize the polyphase decomposition beyond the canonical MVSNet
    # upsampling config (stride=2, k=3, pad=1, out_pad=1); other configs need wider halos.
    assert (stride, K, pad, out_pad) == (2, 3, 1, 1), "only stride=2, k=3, pad=1, out_pad=1"

    P = stride ** 3                                  # 8 polyphase (sub-pixel) outputs
    C8i, C8o = P * Cin, P * Cout
    Do, Ho, Wo = 2 * D, 2 * H, 2 * W
    H1, W1 = H + 1, W + 1
    W1C = W1 * Cin
    M_total = D * H * W

    # ---- glue: bf16 first, NDHWC, pad D/H/W by one, pack (w,cin) into the lane dim ----
    x_cl = jnp.transpose(x.astype(jnp.bfloat16), (0, 2, 3, 4, 1))      # (B,D,H,W,Cin) bf16
    x_p = jnp.pad(x_cl, ((0, 0), (0, 1), (0, 1), (0, 1), (0, 0)))      # (B,D+1,H+1,W+1,Cin)
    x_flat = x_p.reshape(B, D + 1, H1, W1C)                            # lane-dense blocks

    # ---- glue: one-time polyphase weight slab (8*Cin, 8*Cout), VMEM-resident ----
    # For stride=2/pad=1: y[2m]=x[m]*w[1];  y[2m+1]=x[m]*w[2]+x[m+1]*w[0]
    kmap = {(0, 0): 1, (0, 1): None, (1, 0): 2, (1, 1): 0}
    w8 = jnp.zeros((2, 2, 2, Cin, 2, 2, 2, Cout), jnp.float32)
    for od in range(2):
        for oh in range(2):
            for ow in range(2):
                for pd in range(2):
                    for ph in range(2):
                        for pw in range(2):
                            kd, kh, kw = kmap[(pd, od)], kmap[(ph, oh)], kmap[(pw, ow)]
                            if kd is None or kh is None or kw is None:
                                continue
                            w8 = w8.at[od, oh, ow, :, pd, ph, pw, :].set(
                                weight[:, :, kd, kh, kw])
    w8 = w8.reshape(C8i, C8o).astype(jnp.bfloat16)

    # ---- tiling along D: per-generation VMEM budget, keep both v7x cores fed ----
    vmem_limit = _vmem_limit_bytes()
    if block_d is None:
        lane = 128
        per_d = (4 * H1 * W1C                            # x block bf16, double-buffered
                 + 6 * H * W * max(C8i, lane)            # patch/slab temporaries (bf16)
                 + 4 * H * W * max(C8o, lane)            # f32 conv tile
                 + 4 * H * W * C8o)                      # out block bf16, double-buffered
        budget = vmem_limit // 2
        block_d = 1
        for cand in range(1, D + 1):
            if D % cand:
                continue
            if (cand * H * W) % 8 and cand != D:         # keep output sublane blocking legal
                continue
            if per_d * cand > budget:
                continue
            if B == 1 and D >= 2 and cand > D // 2:      # >=2 parallel tiles when batch==1
                continue
            block_d = cand
    td = block_d
    assert D % td == 0, "block_d must divide D"
    ntiles = D // td
    M_t = td * H * W
    if ntiles > 1 and M_t % 8 != 0:
        td, ntiles, M_t = D, 1, M_total

    x_spec = pl.BlockSpec((1, td, H1, W1C), lambda b, i: (b, i, 0, 0))
    xh_spec = pl.BlockSpec((1, 1, H1, W1C), lambda b, i: (b, (i + 1) * td, 0, 0))
    w_spec = pl.BlockSpec((C8i, C8o), lambda b, i: (0, 0))
    cparams = pltpu.CompilerParams(
        dimension_semantics=("parallel", "parallel"),
        vmem_limit_bytes=vmem_limit)

    # ---- kernel A: BN partial sums (conv recomputed in kernel B; no HBM y tensor) ----
    kern_a = functools.partial(_stats_kernel, td=td, H=H, W=W, Cin=Cin)
    psum, psq = pl.pallas_call(
        kern_a,
        out_shape=(jax.ShapeDtypeStruct((B, ntiles, 1, C8o), jnp.float32),
                   jax.ShapeDtypeStruct((B, ntiles, 1, C8o), jnp.float32)),
        grid_spec=pltpu.PrefetchScalarGridSpec(
            num_scalar_prefetch=0, grid=(B, ntiles),
            in_specs=[x_spec, xh_spec, w_spec],
            out_specs=(pl.BlockSpec((1, 1, 1, C8o), lambda b, i: (b, i, 0, 0)),
                       pl.BlockSpec((1, 1, 1, C8o), lambda b, i: (b, i, 0, 0)))),
        compiler_params=cparams,
    )(x_flat, x_flat, w8)

    # ---- glue: finalize batch statistics (tiny per-channel reduction) ----
    n = B * M_total * P                                   # == B * Do * Ho * Wo
    sum_c = jnp.sum(psum, axis=(0, 1, 2)).reshape(P, Cout).sum(axis=0)
    sq_c = jnp.sum(psq, axis=(0, 1, 2)).reshape(P, Cout).sum(axis=0)
    mean = sum_c / n
    var = jnp.maximum(sq_c / n - mean * mean, 0.0)        # clamp: E[y^2]-E[y]^2 can cancel
    scale_c = gamma.astype(jnp.float32) * lax.rsqrt(var + eps)
    shift_c = beta.astype(jnp.float32) - mean * scale_c
    scale_f = jnp.tile(scale_c, P).reshape(1, C8o)
    shift_f = jnp.tile(shift_c, P).reshape(1, C8o)

    # ---- kernel B: conv (recompute) + fused BN affine + LeakyReLU, bf16 store ----
    # (For Cout < 16 the 8*Cout lane width is < 128 -> masked vst, but the HBM block DMA
    #  stays fully contiguous/dense; larger MVSNet layers have 8*Cout >= 128.)
    kern_b = functools.partial(_deconv_bn_act_kernel, td=td, H=H, W=W, Cin=Cin, slope=slope)
    out_flat = pl.pallas_call(
        kern_b,
        out_shape=jax.ShapeDtypeStruct((B, M_total, C8o), jnp.bfloat16),
        grid_spec=pltpu.PrefetchScalarGridSpec(
            num_scalar_prefetch=0, grid=(B, ntiles),
            in_specs=[x_spec, xh_spec, w_spec,
                      pl.BlockSpec((1, C8o), lambda b, i: (0, 0)),
                      pl.BlockSpec((1, C8o), lambda b, i: (0, 0))],
            out_specs=pl.BlockSpec((1, M_t, C8o), lambda b, i: (b, i, 0))),
        compiler_params=cparams,
    )(x_flat, x_flat, w8, scale_f, shift_f)

    # ---- glue: ONE reshape + transpose (depth-to-space fused with the NCDHW transpose) ----
    y = out_flat.reshape(B, D, H, W, 2, 2, 2, Cout)
    out = jnp.transpose(y, (0, 7, 1, 4, 2, 5, 3, 6)).reshape(B, Cout, Do, Ho, Wo)
    return out   # bf16; TODO(synk): downstream cost-volume consumer assumed to accept bf16


def _reference(x, weight, gamma, beta, stride, pad, out_pad, eps, slope):
    """Pure-JAX reference: PyTorch ConvTranspose3d + BN(train stats) + LeakyReLU.

    Conv operands are rounded to bf16 (matching the kernel's MXU input precision);
    the conv itself and all statistics run in full f32.
    """
    xb = x.astype(jnp.bfloat16).astype(jnp.float32)
    wb = weight.astype(jnp.bfloat16).astype(jnp.float32)
    K = weight.shape[2]
    w_conv = jnp.flip(wb, axis=(2, 3, 4)).transpose(1, 0, 2, 3, 4)   # (Cout, Cin, K, K, K)
    y = lax.conv_general_dilated(
        xb, w_conv, window_strides=(1, 1, 1),
        padding=[(K - 1 - pad, K - 1 - pad + out_pad)] * 3,
        lhs_dilation=(stride,) * 3,
        dimension_numbers=("NCDHW", "OIDHW", "NCDHW"),
        precision=lax.Precision.HIGHEST)
    mean = y.mean(axis=(0, 2, 3, 4), keepdims=True)
    var = y.var(axis=(0, 2, 3, 4), keepdims=True)
    g = gamma.reshape(1, -1, 1, 1, 1)
    b = beta.reshape(1, -1, 1, 1, 1)
    z = (y - mean) * lax.rsqrt(var + eps) * g + b
    return jnp.where(z > 0, z, slope * z)


if __name__ == "__main__":
    B, Cin, Cout, D, H, W = 2, 8, 8, 4, 8, 8
    K, stride, pad, out_pad = 3, 2, 1, 1
    eps, slope = 1e-5, 0.01

    key = jax.random.PRNGKey(0)
    k1, k2, k3, k4 = jax.random.split(key, 4)
    x = jax.random.normal(k1, (B, Cin, D, H, W), jnp.float32)
    weight = 0.1 * jax.random.normal(k2, (Cin, Cout, K, K, K), jnp.float32)
    # InPlaceABN params (perturbed from ones/zeros so the affine part is non-trivial)
    gamma = jnp.ones((Cout,), jnp.float32) + 0.1 * jax.random.normal(k3, (Cout,), jnp.float32)
    beta = 0.1 * jax.random.normal(k4, (Cout,), jnp.float32)

    # block_d=2 -> 2 D-tiles per batch, exercising the inter-tile halo path.
    out = deconv_bn_relu_3d(x, weight, gamma, beta, stride=stride, pad=pad,
                            out_pad=out_pad, eps=eps, slope=slope, block_d=2)
    out = jax.block_until_ready(out)

    ref = _reference(x, weight, gamma, beta, stride, pad, out_pad, eps, slope)
    assert out.shape == (B, Cout, 2 * D, 2 * H, 2 * W), out.shape
    max_err = float(jnp.max(jnp.abs(out.astype(jnp.float32) - ref)))
    assert max_err < 2e-2, max_err        # tolerance covers the bf16 output store
    print("KERNEL_OK")
</pallas_src>

<mosaic_0001>
module attributes {stable_mosaic.version = 11 : i64} {
  func.func @_stats_kernel(%arg0: i32, %arg1: i32, %arg2: memref<1x2x9x72xbf16, #tpu.memory_space<vmem>>, %arg3: memref<1x1x9x72xbf16, #tpu.memory_space<vmem>>, %arg4: memref<64x64xbf16, #tpu.memory_space<vmem>>, %arg5: memref<1x1x1x64xf32, #tpu.memory_space<vmem>>, %arg6: memref<1x1x1x64xf32, #tpu.memory_space<vmem>>) attributes {dimension_semantics = [#tpu.dimension_semantics<parallel>, #tpu.dimension_semantics<parallel>], iteration_bounds = array<i64: 2, 2>, scalar_prefetch = 0 : i64, scratch_operands = 0 : i64, tpu.core_type = #tpu.core_type<tc>, window_params = [{transform_indices = @transform_0, window_bounds = array<i64: 1, 2, 9, 72>}, {transform_indices = @transform_1, window_bounds = array<i64: 1, 1, 9, 72>}, {pipeline_mode = #tpu.pipeline_mode<synchronous>, transform_indices = @transform_2, window_bounds = array<i64: 64, 64>}, {transform_indices = @transform_3, window_bounds = array<i64: 1, 1, 1, 64>}, {transform_indices = @transform_4, window_bounds = array<i64: 1, 1, 1, 64>}]} {
    %c0 = arith.constant 0 : index
    %c0_0 = arith.constant 0 : index
    %c0_1 = arith.constant 0 : index
    %c0_2 = arith.constant 0 : index
    %0 = vector.load %arg2[%c0, %c0_0, %c0_1, %c0_2] : memref<1x2x9x72xbf16, #tpu.memory_space<vmem>>, vector<1x2x9x72xbf16>
    %1 = vector.shape_cast %0 : vector<1x2x9x72xbf16> to vector<2x9x72xbf16>
    %c0_3 = arith.constant 0 : index
    %c0_4 = arith.constant 0 : index
    %c0_5 = arith.constant 0 : index
    %c0_6 = arith.constant 0 : index
    %2 = vector.load %arg3[%c0_3, %c0_4, %c0_5, %c0_6] : memref<1x1x9x72xbf16, #tpu.memory_space<vmem>>, vector<1x1x9x72xbf16>
    %3 = vector.shape_cast %2 : vector<1x1x9x72xbf16> to vector<1x9x72xbf16>
    %4 = tpu.concatenate %1, %3 in 0 : vector<2x9x72xbf16>, vector<1x9x72xbf16> -> vector<3x9x72xbf16>
    %5 = vector.shape_cast %4 : vector<3x9x72xbf16> to vector<3x9x9x8xbf16>
    %6 = vector.extract_strided_slice %5 {offsets = [0, 0, 0, 0], sizes = [2, 8, 8, 8], strides = [1, 1, 1, 1]} : vector<3x9x9x8xbf16> to vector<2x8x8x8xbf16>
    %7 = vector.extract_strided_slice %5 {offsets = [0, 0, 1, 0], sizes = [2, 8, 8, 8], strides = [1, 1, 1, 1]} : vector<3x9x9x8xbf16> to vector<2x8x8x8xbf16>
    %8 = vector.extract_strided_slice %5 {offsets = [0, 1, 0, 0], sizes = [2, 8, 8, 8], strides = [1, 1, 1, 1]} : vector<3x9x9x8xbf16> to vector<2x8x8x8xbf16>
    %9 = vector.extract_strided_slice %5 {offsets = [0, 1, 1, 0], sizes = [2, 8, 8, 8], strides = [1, 1, 1, 1]} : vector<3x9x9x8xbf16> to vector<2x8x8x8xbf16>
    %10 = vector.extract_strided_slice %5 {offsets = [1, 0, 0, 0], sizes = [2, 8, 8, 8], strides = [1, 1, 1, 1]} : vector<3x9x9x8xbf16> to vector<2x8x8x8xbf16>
    %11 = vector.extract_strided_slice %5 {offsets = [1, 0, 1, 0], sizes = [2, 8, 8, 8], strides = [1, 1, 1, 1]} : vector<3x9x9x8xbf16> to vector<2x8x8x8xbf16>
    %12 = vector.extract_strided_slice %5 {offsets = [1, 1, 0, 0], sizes = [2, 8, 8, 8], strides = [1, 1, 1, 1]} : vector<3x9x9x8xbf16> to vector<2x8x8x8xbf16>
    %13 = vector.extract_strided_slice %5 {offsets = [1, 1, 1, 0], sizes = [2, 8, 8, 8], strides = [1, 1, 1, 1]} : vector<3x9x9x8xbf16> to vector<2x8x8x8xbf16>
    %14 = tpu.concatenate %6, %7, %8, %9, %10, %11, %12, %13 in 3 : vector<2x8x8x8xbf16>, vector<2x8x8x8xbf16>, vector<2x8x8x8xbf16>, vector<2x8x8x8xbf16>, vector<2x8x8x8xbf16>, vector<2x8x8x8xbf16>, vector<2x8x8x8xbf16>, vector<2x8x8x8xbf16> -> vector<2x8x8x64xbf16>
    %15 = vector.shape_cast %14 : vector<2x8x8x64xbf16> to vector<128x64xbf16>
    %c0_7 = arith.constant 0 : index
    %c0_8 = arith.constant 0 : index
    %16 = vector.load %arg4[%c0_7, %c0_8] : memref<64x64xbf16, #tpu.memory_space<vmem>>, vector<64x64xbf16>
    %cst = arith.constant dense<0.000000e+00> : vector<128x64xf32>
    %17 = tpu.matmul %15, %16, %cst {dimension_numbers = #tpu.dot_dimension_numbers<[1], [0], [0], [1], [0, 0, 1, 1], [], []>} : vector<128x64xbf16>, vector<64x64xbf16>, vector<128x64xf32> -> vector<128x64xf32>
    %cst_9 = arith.constant dense<0.000000e+00> : vector<64xf32>
    %18 = vector.multi_reduction <add>, %17, %cst_9 [0] : vector<128x64xf32> to vector<64xf32>
    %19 = vector.shape_cast %18 : vector<64xf32> to vector<1x64xf32>
    %c0_10 = arith.constant 0 : index
    %c0_11 = arith.constant 0 : index
    %c0_12 = arith.constant 0 : index
    %c0_13 = arith.constant 0 : index
    %20 = vector.load %arg5[%c0_10, %c0_11, %c0_12, %c0_13] : memref<1x1x1x64xf32, #tpu.memory_space<vmem>>, vector<1x1x1x64xf32>
    %21 = vector.shape_cast %20 : vector<1x1x1x64xf32> to vector<1x64xf32>
    %22 = vector.shape_cast %19 : vector<1x64xf32> to vector<1x1x1x64xf32>
    tpu.vector_store %arg5[%c0_10, %c0_11, %c0_12, %c0_13], %22 {strides = array<i32>} : memref<1x1x1x64xf32, #tpu.memory_space<vmem>>, vector<1x1x1x64xf32>,
    %23 = arith.mulf %17, %17 : vector<128x64xf32>
    %cst_14 = arith.constant dense<0.000000e+00> : vector<64xf32>
    %24 = vector.multi_reduction <add>, %23, %cst_14 [0] : vector<128x64xf32> to vector<64xf32>
    %25 = vector.shape_cast %24 : vector<64xf32> to vector<1x64xf32>
    %c0_15 = arith.constant 0 : index
    %c0_16 = arith.constant 0 : index
    %c0_17 = arith.constant 0 : index
    %c0_18 = arith.constant 0 : index
    %26 = vector.load %arg6[%c0_15, %c0_16, %c0_17, %c0_18] : memref<1x1x1x64xf32, #tpu.memory_space<vmem>>, vector<1x1x1x64xf32>
    %27 = vector.shape_cast %26 : vector<1x1x1x64xf32> to vector<1x64xf32>
    %28 = vector.shape_cast %25 : vector<1x64xf32> to vector<1x1x1x64xf32>
    tpu.vector_store %arg6[%c0_15, %c0_16, %c0_17, %c0_18], %28 {strides = array<i32>} : memref<1x1x1x64xf32, #tpu.memory_space<vmem>>, vector<1x1x1x64xf32>,
    return
  }
  func.func @transform_0(%arg0: i32, %arg1: i32) -> (i32, i32, i32, i32) {
    %c0_i32 = arith.constant 0 : i32
    %c0_i32_0 = arith.constant 0 : i32
    %c0_i32_1 = arith.constant 0 : i32
    return %arg0, %arg1, %c0_i32, %c0_i32_0 : i32, i32, i32, i32
  }
  func.func @transform_1(%arg0: i32, %arg1: i32) -> (i32, i32, i32, i32) {
    %c1_i32 = arith.constant 1 : i32
    %0 = arith.addi %arg1, %c1_i32 : i32
    %c2_i32 = arith.constant 2 : i32
    %1 = arith.muli %0, %c2_i32 : i32
    %c0_i32 = arith.constant 0 : i32
    %c0_i32_0 = arith.constant 0 : i32
    %c0_i32_1 = arith.constant 0 : i32
    return %arg0, %1, %c0_i32, %c0_i32_0 : i32, i32, i32, i32
  }
  func.func @transform_2(%arg0: i32, %arg1: i32) -> (i32, i32) {
    %c0_i32 = arith.constant 0 : i32
    %c0_i32_0 = arith.constant 0 : i32
    %c0_i32_1 = arith.constant 0 : i32
    return %c0_i32, %c0_i32_0 : i32, i32
  }
  func.func @transform_3(%arg0: i32, %arg1: i32) -> (i32, i32, i32, i32) {
    %c0_i32 = arith.constant 0 : i32
    %c0_i32_0 = arith.constant 0 : i32
    %c0_i32_1 = arith.constant 0 : i32
    return %arg0, %arg1, %c0_i32, %c0_i32_0 : i32, i32, i32, i32
  }
  func.func @transform_4(%arg0: i32, %arg1: i32) -> (i32, i32, i32, i32) {
    %c0_i32 = arith.constant 0 : i32
    %c0_i32_0 = arith.constant 0 : i32
    %c0_i32_1 = arith.constant 0 : i32
    return %arg0, %arg1, %c0_i32, %c0_i32_0 : i32, i32, i32, i32
  }
}

</mosaic_0001>

<llo_original>
// kernel: tpu_custom_call.1
$region0: #{tpu_custom_call.1}
  #allocation0 [shape = 'u32[]', space=smem, size = 0x4, offset = 0x4, fixed_abs, tag = 'smem constant byte address 0x4 - core index']
  #allocation1 [shape = 'u32[144,128]{1,0:T(1,128)}', space=vmem, size = 0x12000, scoped, tag = 'internal scratch']
  %s0 = inlined_call_operand.vmem [shape: bf16[2,5,9,72], index: 0, kind: input, shape index: {}]
  %s1 = inlined_call_operand.vmem [shape: bf16[2,5,9,72], index: 1, kind: input, shape index: {}]
  %s2 = inlined_call_operand.vmem [shape: bf16[64,64], index: 2, kind: input, shape index: {}]
  %s3 = inlined_call_operand.hbm [shape: f32[2,2,1,64], index: 3, kind: output, shape index: {0}]
  %s4 = inlined_call_operand.hbm [shape: f32[2,2,1,64], index: 4, kind: output, shape index: {1}]
  %5 = xla_tuple %s3, %s4
  %s6 = sld [smem:[#allocation0]]
  $region53: #{tpu_custom_call.1} parent=0
    _
  %s8 = ssub.s32 1, %s6
  %s9 = scalar_select 0, %s8, %s6
  $region1: #{tpu_custom_call.1} parent=0
    #allocation2 [shape = 'u8[1024]{0}', space=vmem, size = 0x400, scoped, tag = 'output window, operand 0']
    #allocation3 [shape = 's32[2]{0}', space=sflag, size = 0x8, scoped, tag = 'scoped memory for tpu_custom_call.1']
    #allocation4 [shape = 'u8[1024]{0}', space=vmem, size = 0x400, scoped, tag = 'output window, operand 1']
    #allocation5 [shape = 's32[2]{0}', space=sflag, size = 0x8, scoped, tag = 'scoped memory for tpu_custom_call.1']
    %10 = vsyncpa [#allocation3], 0
    %s11 = scalar_lea.sflag [#allocation3], 1
    %12 = vsyncpa %s11, 0
    %13 = vsyncpa [#allocation5], 0
    %s14 = scalar_lea.sflag [#allocation5], 1
    %15 = vsyncpa %s14, 0
    loop: start=0, step=1, limit=6
    $region2: #{tpu_custom_call.1} parent=1 // loop_pre_header
      _
    $region3: #{tpu_custom_call.1} parent=1 // loop_header
      %s17 = sphi 0, %s21
      %p18 = scmp.ge.s32.totalorder %s17, 6
      %s24 = sphi 0, %s36
      %s25 = sphi 0, %s32
      %s26 = sphi 0, %s24
      %s27 = sphi 0, %s25
      %s28 = sphi 0, %s26
      %s29 = sphi 0, %s27
      %s41 = sphi 0, %s43
      %s44 = sphi 0, %s41
      %s45 = sphi 0, %s44
      %s61 = sphi 0, %s45
      %s73 = sphi 0, %s75
      %s76 = sphi 0, %s73
      %s77 = sphi 0, %s76
      %s93 = sphi 0, %s77
      %s97 = sphi 0, %s97
      %s99 = sphi 0, %s97
      %s100 = sphi 0, %s99
      %s114 = sphi 0, %s100
      %s122 = sphi 0, %s124
      %s125 = sphi 0, %s122
      %s126 = sphi 0, %s125
      %s142 = sphi 0, %s126
      %s150 = sphi 0, %s152
      %s153 = sphi 0, %s150
      %s154 = sphi 0, %s153
      %s170 = sphi 0, %s154
    $region4: #{tpu_custom_call.1} parent=1 // loop_header_branch
      %20 = sbr.rel (%p18) target = $region8
    $region5: #{tpu_custom_call.1} parent=1 // loop_body
      %s22 = ssub.s32 %s17, 1
      %s23 = ssub.s32 %s17, 2
      %s30 = sadd.s32 1, %s25
      %p31 = scmp.ge.s32.totalorder %s30, 2
      %s32 = scalar_select %p31, 0, %s30
      %s33 = sadd.s32 1, %s24
      %s34 = scalar_select %p31, %s33, %s24
      %p35 = scmp.ge.s32.totalorder %s34, 2
      %s36 = scalar_select %p35, 0, %s34
      %s37 = ssub.s32 %s24, %s36
      %s38 = ssub.s32 %s25, %s32
      %s39 = sor.u32 %s37, %s38
      %p40 = scmp.eq.s32.totalorder %s39, 0
      %s42 = sadd.s32 %s41, 1
      %s43 = scalar_select %p40, %s41, %s42
      %p46 = pneg %p40
      %p47 = scmp.eq.s32.totalorder %s17, 3
      %p48 = por %p46, %p47
      %p49 = scmp.ne.s32.totalorder %s41, %s44
      %p50 = scmp.eq.s32.totalorder %s17, 0
      %p51 = por %p49, %p50
      %p52 = scmp.ne.s32.totalorder %s41, %s44
      %p53 = scmp.eq.s32.totalorder %s22, 3
      %p54 = por %p52, %p53
      %p55 = scmp.ne.s32.totalorder %s44, %s45
      %p56 = scmp.eq.s32.totalorder %s22, 0
      %p57 = por %p55, %p56
      %p58 = scmp.ne.s32.totalorder %s44, %s45
      %p59 = scmp.eq.s32.totalorder %s23, 3
      %p60 = por %p58, %p59
      %p62 = scmp.ne.s32.totalorder %s45, %s61
      %p63 = scmp.eq.s32.totalorder %s23, 0
      %p64 = por %p62, %p63
      %s65 = sadd.s32 %s25, 1
      %s66 = smul.u32 %s65, 2
      %s67 = sadd.s32 %s32, 1
      %s68 = smul.u32 %s67, 2
      %s69 = ssub.s32 %s24, %s36
      %s70 = ssub.s32 %s66, %s68
      %s71 = sor.u32 %s69, %s70
      %p72 = scmp.eq.s32.totalorder %s71, 0
      %s74 = sadd.s32 %s73, 1
      %s75 = scalar_select %p72, %s73, %s74
      %p78 = pneg %p72
      %p79 = scmp.eq.s32.totalorder %s17, 3
      %p80 = por %p78, %p79
      %p81 = scmp.ne.s32.totalorder %s73, %s76
      %p82 = scmp.eq.s32.totalorder %s17, 0
      %p83 = por %p81, %p82
      %p84 = scmp.ne.s32.totalorder %s73, %s76
      %p85 = scmp.eq.s32.totalorder %s22, 3
      %p86 = por %p84, %p85
      %p87 = scmp.ne.s32.totalorder %s76, %s77
      %p88 = scmp.eq.s32.totalorder %s22, 0
      %p89 = por %p87, %p88
      %p90 = scmp.ne.s32.totalorder %s76, %s77
      %p91 = scmp.eq.s32.totalorder %s23, 3
      %p92 = por %p90, %p91
      %p94 = scmp.ne.s32.totalorder %s77, %s93
      %p95 = scmp.eq.s32.totalorder %s23, 0
      %p96 = por %p94, %p95
      %s98 = sadd.s32 %s97, 1
      %p101 = scmp.eq.s32.totalorder %s17, 3
      %p102 = scmp.ne.s32.totalorder %s97, %s99
      %p103 = scmp.eq.s32.totalorder %s17, 0
      %p104 = por %p102, %p103
      %p105 = scmp.ne.s32.totalorder %s97, %s99
      %p106 = scmp.eq.s32.totalorder %s22, 3
      %p107 = por %p105, %p106
      %p108 = scmp.ne.s32.totalorder %s99, %s100
      %p109 = scmp.eq.s32.totalorder %s22, 0
      %p110 = por %p108, %p109
      %p111 = scmp.ne.s32.totalorder %s99, %s100
      %p112 = scmp.eq.s32.totalorder %s23, 3
      %p113 = por %p111, %p112
      %p115 = scmp.ne.s32.totalorder %s100, %s114
      %p116 = scmp.eq.s32.totalorder %s23, 0
      %p117 = por %p115, %p116
      %s118 = ssub.s32 %s24, %s36
      %s119 = ssub.s32 %s25, %s32
      %s120 = sor.u32 %s118, %s119
      %p121 = scmp.eq.s32.totalorder %s120, 0
      %s123 = sadd.s32 %s122, 1
      %s124 = scalar_select %p121, %s122, %s123
      %p127 = pneg %p121
      %p128 = scmp.eq.s32.totalorder %s17, 3
      %p129 = por %p127, %p128
      %p130 = scmp.ne.s32.totalorder %s122, %s125
      %p131 = scmp.eq.s32.totalorder %s17, 0
      %p132 = por %p130, %p131
      %p133 = scmp.ne.s32.totalorder %s122, %s125
      %p134 = scmp.eq.s32.totalorder %s22, 3
      %p135 = por %p133, %p134
      %p136 = scmp.ne.s32.totalorder %s125, %s126
      %p137 = scmp.eq.s32.totalorder %s22, 0
      %p138 = por %p136, %p137
      %p139 = scmp.ne.s32.totalorder %s125, %s126
      %p140 = scmp.eq.s32.totalorder %s23, 3
      %p141 = por %p139, %p140
      %p143 = scmp.ne.s32.totalorder %s126, %s142
      %p144 = scmp.eq.s32.totalorder %s23, 0
      %p145 = por %p143, %p144
      %s146 = ssub.s32 %s24, %s36
      %s147 = ssub.s32 %s25, %s32
      %s148 = sor.u32 %s146, %s147
      %p149 = scmp.eq.s32.totalorder %s148, 0
      %s151 = sadd.s32 %s150, 1
      %s152 = scalar_select %p149, %s150, %s151
      %p155 = pneg %p149
      %p156 = scmp.eq.s32.totalorder %s17, 3
      %p157 = por %p155, %p156
      %p158 = scmp.ne.s32.totalorder %s150, %s153
      %p159 = scmp.eq.s32.totalorder %s17, 0
      %p160 = por %p158, %p159
      %p161 = scmp.ne.s32.totalorder %s150, %s153
      %p162 = scmp.eq.s32.totalorder %s22, 3
      %p163 = por %p161, %p162
      %p164 = scmp.ne.s32.totalorder %s153, %s154
      %p165 = scmp.eq.s32.totalorder %s22, 0
      %p166 = por %p164, %p165
      %p167 = scmp.ne.s32.totalorder %s153, %s154
      %p168 = scmp.eq.s32.totalorder %s23, 3
      %p169 = por %p167, %p168
      %p171 = scmp.ne.s32.totalorder %s154, %s170
      %p172 = scmp.eq.s32.totalorder %s23, 0
      %p173 = por %p171, %p172
      %p174 = scmp.le.s32.totalorder 1, %s17
      %p175 = scmp.lt.s32.totalorder %s17, 5
      %p176 = pnand %p174, %p175
      %p177 = pneg %p176
      // Predicated region
      $region9: #{tpu_custom_call.1} parent=5 // pred_check
        _
      $region10: #{tpu_custom_call.1} parent=5 // pred_check_branch
        %179 = sbr.rel (%p176) target = $region12
      $region11: #{tpu_custom_call.1} parent=5 // pred_region
        %s180 = ssub.s32 %s17, 1
        // Predicated region
        $region13: #{tpu_custom_call.1} parent=11 // pred_check
          %p181 = pneg %p110
        $region14: #{tpu_custom_call.1} parent=11 // pred_check_branch
          %183 = sbr.rel (%p181) target = $region16
        $region15: #{tpu_custom_call.1} parent=11 // pred_region
          _
        $region16: #{tpu_custom_call.1} parent=11 // pred_fallthru
          _
      $region12: #{tpu_custom_call.1} parent=5 // pred_fallthru
        _
      %p184 = scmp.lt.s32.totalorder %s17, 4
      // Predicated region
      $region17: #{tpu_custom_call.1} parent=5 // pred_check
        %p185 = pneg %p184
      $region18: #{tpu_custom_call.1} parent=5 // pred_check_branch
        %187 = sbr.rel (%p185) target = $region20
      $region19: #{tpu_custom_call.1} parent=5 // pred_region
        // Predicated region
        $region21: #{tpu_custom_call.1} parent=19 // pred_check
          %p188 = pneg %p51
        $region22: #{tpu_custom_call.1} parent=19 // pred_check_branch
          %190 = sbr.rel (%p188) target = $region24
        $region23: #{tpu_custom_call.1} parent=19 // pred_region
          %s191 = smul.u32 2, %s25
          %s192 = ssub.s32 5, %s191
          %p193 = scmp.lt.s32.totalorder %s192, 2
          %s194 = scalar_select %p193, %s192, 2
          %s195 = smul.u32 64, %s194
          %s196 = smul.u32 %s195, 2
          %p197 = scmp.lt.s32.totalorder %s24, 1
          %s198 = scalar_select %p197, %s24, 1
          %p199 = scmp.lt.s32.totalorder %s191, 4
          %s200 = scalar_select %p199, %s191, 4
          %s201 = smul.addr %s200, 2
          %s202 = smul.addr %s198, 10
          %s203 = sadd.s32 %s201, %s202
          %s204 = smul.addr %s203, 4
          %s205 = scalar_lea.vmem %s0, %s204
          %s206 = smul.u32 2, %s25
          %s207 = ssub.s32 5, %s206
          %p208 = scmp.lt.s32.totalorder %s207, 2
          %s209 = scalar_select %p208, %s207, 2
          %s210 = smul.u32 64, %s209
          %s211 = smul.u32 %s210, 2
        $region24: #{tpu_custom_call.1} parent=19 // pred_fallthru
          _
        // Predicated region
        $region25: #{tpu_custom_call.1} parent=19 // pred_check
          %p212 = pneg %p83
        $region26: #{tpu_custom_call.1} parent=19 // pred_check_branch
          %214 = sbr.rel (%p212) target = $region28
        $region27: #{tpu_custom_call.1} parent=19 // pred_region
          %s215 = sadd.s32 %s25, 1
          %s216 = smul.u32 %s215, 2
          %p217 = scmp.lt.s32.totalorder %s24, 1
          %s218 = scalar_select %p217, %s24, 1
          %p219 = scmp.lt.s32.totalorder %s216, 4
          %s220 = scalar_select %p219, %s216, 4
          %s221 = smul.addr %s220, 2
          %s222 = smul.addr %s218, 10
          %s223 = sadd.s32 %s221, %s222
          %s224 = smul.addr %s223, 4
          %s225 = scalar_lea.vmem %s1, %s224
          %s226 = sadd.s32 %s25, 1
          %s227 = smul.u32 %s226, 2
        $region28: #{tpu_custom_call.1} parent=19 // pred_fallthru
          _
      $region20: #{tpu_custom_call.1} parent=5 // pred_fallthru
        _
      %p228 = scmp.le.s32.totalorder 1, %s17
      %p229 = scmp.lt.s32.totalorder %s17, 5
      %p230 = pnand %p228, %p229
      %p231 = pneg %p230
      // Predicated region
      $region29: #{tpu_custom_call.1} parent=5 // pred_check
        _
      $region30: #{tpu_custom_call.1} parent=5 // pred_check_branch
        %233 = sbr.rel (%p230) target = $region32
      $region31: #{tpu_custom_call.1} parent=5 // pred_region
        %s234 = ssub.s32 %s17, 1
        %s235 = smul.u32 2, %s27
        %s236 = ssub.s32 5, %s235
        %p237 = scmp.lt.s32.totalorder %s236, 2
        %s238 = scalar_select %p237, %s236, 2
        %s239 = smul.u32 64, %s238
        %s240 = smul.u32 %s239, 2
        %p241 = scmp.lt.s32.totalorder %s26, 1
        %s242 = scalar_select %p241, %s26, 1
        %p243 = scmp.lt.s32.totalorder %s235, 4
        %s244 = scalar_select %p243, %s235, 4
        %s245 = smul.addr %s244, 2
        %s246 = smul.addr %s242, 10
        %s247 = sadd.s32 %s245, %s246
        %s248 = smul.addr %s247, 4
        %s249 = scalar_lea.vmem %s0, %s248
        %p250 = pneg %p57
        %p251 = pneg %p54
        %s252 = sadd.s32 %s27, 1
        %s253 = smul.u32 %s252, 2
        %p254 = scmp.lt.s32.totalorder %s26, 1
        %s255 = scalar_select %p254, %s26, 1
        %p256 = scmp.lt.s32.totalorder %s253, 4
        %s257 = scalar_select %p256, %s253, 4
        %s258 = smul.addr %s257, 2
        %s259 = smul.addr %s255, 10
        %s260 = sadd.s32 %s258, %s259
        %s261 = smul.addr %s260, 4
        %s262 = scalar_lea.vmem %s1, %s261
        %p263 = pneg %p89
        %p264 = pneg %p86
        %p265 = pneg %p110
        %p266 = pneg %p107
        %p267 = pneg %p138
        %p268 = pneg %p135
        %s269 = sand.u32 %s125, 1
        %s270 = scalar_lea.sflag [#allocation3], %s269
        %s271 = sand.u32 %s125, 1
        %s272 = scalar_lea.vmem [#allocation2], %s271
        %p273 = pneg %p166
        %p274 = pneg %p163
        %s275 = sand.u32 %s153, 1
        %s276 = scalar_lea.sflag [#allocation5], %s275
        %s277 = sand.u32 %s153, 1
        %s278 = scalar_lea.vmem [#allocation4], %s277
        %s279 = smul.u32 2, %s27
        %s280 = ssub.s32 5, %s279
        %p281 = scmp.lt.s32.totalorder %s280, 2
        %s282 = scalar_select %p281, %s280, 2
        %s283 = smul.u32 64, %s282
        %s284 = smul.u32 %s283, 2
        %p285 = scmp.lt.s32.totalorder %s26, 1
        %s286 = scalar_select %p285, %s26, 1
        %p287 = scmp.lt.s32.totalorder %s279, 4
        %s288 = scalar_select %p287, %s279, 4
        %s289 = smul.addr %s288, 2
        %s290 = smul.addr %s286, 10
        %s291 = sadd.s32 %s289, %s290
        %s292 = smul.addr %s291, 4
        %s293 = scalar_lea.vmem %s0, %s292
        %s294 = smul.u32 2, %s27
        %s295 = ssub.s32 5, %s294
        %p296 = scmp.lt.s32.totalorder %s295, 2
        %s297 = scalar_select %p296, %s295, 2
        %s298 = smul.u32 64, %s297
        %s299 = smul.u32 %s298, 2
        %s300 = sadd.s32 %s27, 1
        %s301 = smul.u32 %s300, 2
        %p302 = scmp.lt.s32.totalorder %s26, 1
        %s303 = scalar_select %p302, %s26, 1
        %p304 = scmp.lt.s32.totalorder %s301, 4
        %s305 = scalar_select %p304, %s301, 4
        %s306 = smul.addr %s305, 2
        %s307 = smul.addr %s303, 10
        %s308 = sadd.s32 %s306, %s307
        %s309 = smul.addr %s308, 4
        %s310 = scalar_lea.vmem %s1, %s309
        %s311 = sadd.s32 %s27, 1
        %s312 = smul.u32 %s311, 2
        %v314 = vld [vmem:[%s293] sm:$0xf]
        %v315 = vld [vmem:[%s293 + $0x4] sm:$0x1]
        %v316 = vld [vmem:[%s293 + $0x8] sm:$0xf]
        %v317 = vld [vmem:[%s293 + $0xc] sm:$0x1]
        %v318 = vld [vmem:[%s310] sm:$0xf]
        %v319 = vld [vmem:[%s310 + $0x4] sm:$0x1]
        %326 = vrot.lane.b32.xlu0 %v314, 120
        %v327 = vpop.permute.xlu0 %326
        %328 = vrot.lane.b32.xlu0 %v315, 120
        %v329 = vpop.permute.xlu0 %328
        %330 = vrot.lane.b32.xlu0 %v316, 120
        %v331 = vpop.permute.xlu0 %330
        %332 = vrot.lane.b32.xlu0 %v317, 120
        %v333 = vpop.permute.xlu0 %332
        %334 = vrot.lane.b32.xlu0 %v318, 120
        %v335 = vpop.permute.xlu0 %334
        %336 = vrot.lane.b32.xlu0 %v319, 120
        %v337 = vpop.permute.xlu0 %336
        %344 = vrot.lane.b32.xlu0 %v314, 112
        %v345 = vpop.permute.xlu0 %344
        %346 = vrot.lane.b32.xlu0 %v315, 112
        %v347 = vpop.permute.xlu0 %346
        %348 = vrot.lane.b32.xlu0 %v316, 112
        %v349 = vpop.permute.xlu0 %348
        %350 = vrot.lane.b32.xlu0 %v317, 112
        %v351 = vpop.permute.xlu0 %350
        %352 = vrot.lane.b32.xlu0 %v318, 112
        %v353 = vpop.permute.xlu0 %352
        %354 = vrot.lane.b32.xlu0 %v319, 112
        %v355 = vpop.permute.xlu0 %354
        %362 = vrot.lane.b32.xlu0 %v314, 104
        %v363 = vpop.permute.xlu0 %362
        %364 = vrot.lane.b32.xlu0 %v315, 104
        %v365 = vpop.permute.xlu0 %364
        %366 = vrot.lane.b32.xlu0 %v316, 104
        %v367 = vpop.permute.xlu0 %366
        %368 = vrot.lane.b32.xlu0 %v317, 104
        %v369 = vpop.permute.xlu0 %368
        %370 = vrot.lane.b32.xlu0 %v318, 104
        %v371 = vpop.permute.xlu0 %370
        %372 = vrot.lane.b32.xlu0 %v319, 104
        %v373 = vpop.permute.xlu0 %372
        %380 = vrot.lane.b32.xlu0 %v314, 96
        %v381 = vpop.permute.xlu0 %380
        %382 = vrot.lane.b32.xlu0 %v315, 96
        %v383 = vpop.permute.xlu0 %382
        %384 = vrot.lane.b32.xlu0 %v316, 96
        %v385 = vpop.permute.xlu0 %384
        %386 = vrot.lane.b32.xlu0 %v317, 96
        %v387 = vpop.permute.xlu0 %386
        %388 = vrot.lane.b32.xlu0 %v318, 96
        %v389 = vpop.permute.xlu0 %388
        %390 = vrot.lane.b32.xlu0 %v319, 96
        %v391 = vpop.permute.xlu0 %390
        %398 = vrot.lane.b32.xlu0 %v314, 88
        %v399 = vpop.permute.xlu0 %398
        %400 = vrot.lane.b32.xlu0 %v315, 88
        %v401 = vpop.permute.xlu0 %400
        %402 = vrot.lane.b32.xlu0 %v316, 88
        %v403 = vpop.permute.xlu0 %402
        %404 = vrot.lane.b32.xlu0 %v317, 88
        %v405 = vpop.permute.xlu0 %404
        %406 = vrot.lane.b32.xlu0 %v318, 88
        %v407 = vpop.permute.xlu0 %406
        %408 = vrot.lane.b32.xlu0 %v319, 88
        %v409 = vpop.permute.xlu0 %408
        %416 = vrot.lane.b32.xlu0 %v314, 80
        %v417 = vpop.permute.xlu0 %416
        %418 = vrot.lane.b32.xlu0 %v315, 80
        %v419 = vpop.permute.xlu0 %418
        %420 = vrot.lane.b32.xlu0 %v316, 80
        %v421 = vpop.permute.xlu0 %420
        %422 = vrot.lane.b32.xlu0 %v317, 80
        %v423 = vpop.permute.xlu0 %422
        %424 = vrot.lane.b32.xlu0 %v318, 80
        %v425 = vpop.permute.xlu0 %424
        %426 = vrot.lane.b32.xlu0 %v319, 80
        %v427 = vpop.permute.xlu0 %426
        %434 = vrot.lane.b32.xlu0 %v314, 72
        %v435 = vpop.permute.xlu0 %434
        %436 = vrot.lane.b32.xlu0 %v315, 72
        %v437 = vpop.permute.xlu0 %436
        %438 = vrot.lane.b32.xlu0 %v316, 72
        %v439 = vpop.permute.xlu0 %438
        %440 = vrot.lane.b32.xlu0 %v317, 72
        %v441 = vpop.permute.xlu0 %440
        %442 = vrot.lane.b32.xlu0 %v318, 72
        %v443 = vpop.permute.xlu0 %442
        %444 = vrot.lane.b32.xlu0 %v319, 72
        %v445 = vpop.permute.xlu0 %444
        %452 = vrot.lane.b32.xlu0 %v314, 64
        %v453 = vpop.permute.xlu0 %452
        %454 = vrot.lane.b32.xlu0 %v315, 64
        %v455 = vpop.permute.xlu0 %454
        %456 = vrot.lane.b32.xlu0 %v316, 64
        %v457 = vpop.permute.xlu0 %456
        %458 = vrot.lane.b32.xlu0 %v317, 64
        %v459 = vpop.permute.xlu0 %458
        %460 = vrot.lane.b32.xlu0 %v318, 64
        %v461 = vpop.permute.xlu0 %460
        %462 = vrot.lane.b32.xlu0 %v319, 64
        %v463 = vpop.permute.xlu0 %462
        %v464 = vcombine.low %v314, %v381
        %v466 = vunpack.c.l.s4 1983009808
        %v467 = vunpack.c.0.s8 %v466
        %v468 = vlaneseq
        %v469 = vshrl.u32 %v468, 7
        %v470 = vsub.s32 %v467, %v469
        %v471 = vrot.slane %v464, %v470
        %v472 = vcombine.low %v345, %v417
        %v474 = vunpack.c.l.s4 1983009808
        %v475 = vunpack.c.0.s8 %v474
        %v476 = vlaneseq
        %v477 = vshrl.u32 %v476, 7
        %v478 = vsub.s32 %v475, %v477
        %v479 = vrot.slane %v472, %v478
        %v480 = vcombine.low %v471, %v479
        %v481 = vcombine.high %v471, %v479
        %v483 = vunpack.c.l.s4 1934713408
        %v484 = vunpack.c.0.s8 %v483
        %v485 = vlaneseq
        %v486 = vshrl.u32 %v485, 7
        %v487 = vsub.s32 %v484, %v486
        %v488 = vrot.slane %v480, %v487
        %v490 = vunpack.c.l.s4 1934713408
        %v491 = vunpack.c.0.s8 %v490
        %v492 = vlaneseq
        %v493 = vshrl.u32 %v492, 7
        %v494 = vsub.s32 %v491, %v493
        %v495 = vrot.slane %v481, %v494
        %v496 = vcombine.high %v488, 0
        %v497 = vcombine.high %v495, 0
        %v498 = vcombine.low %v327, %v399
        %v500 = vunpack.c.l.s4 1983009808
        %v501 = vunpack.c.0.s8 %v500
        %v502 = vlaneseq
        %v503 = vshrl.u32 %v502, 7
        %v504 = vsub.s32 %v501, %v503
        %v505 = vrot.slane %v498, %v504
        %v506 = vcombine.low %v363, %v435
        %v508 = vunpack.c.l.s4 1983009808
        %v509 = vunpack.c.0.s8 %v508
        %v510 = vlaneseq
        %v511 = vshrl.u32 %v510, 7
        %v512 = vsub.s32 %v509, %v511
        %v513 = vrot.slane %v506, %v512
        %v514 = vcombine.low %v505, %v513
        %v515 = vcombine.high %v505, %v513
        %v517 = vunpack.c.l.s4 1934713408
        %v518 = vunpack.c.0.s8 %v517
        %v519 = vlaneseq
        %v520 = vshrl.u32 %v519, 7
        %v521 = vsub.s32 %v518, %v520
        %v522 = vrot.slane %v514, %v521
        %v524 = vunpack.c.l.s4 1934713408
        %v525 = vunpack.c.0.s8 %v524
        %v526 = vlaneseq
        %v527 = vshrl.u32 %v526, 7
        %v528 = vsub.s32 %v525, %v527
        %v529 = vrot.slane %v515, %v528
        %v530 = vcombine.high %v522, 0
        %v531 = vcombine.high %v529, 0
        %v534 = vunpack.c.l.s4 1983009808
        %v535 = vunpack.c.0.s8 %v534
        %v536 = vlaneseq
        %v537 = vshrl.u32 %v536, 7
        %v538 = vsub.s32 %v535, %v537
        %v539 = vrot.slane %v453, %v538
        %v540 = vcombine.high %v539, 0
        %v542 = vunpack.c.l.s4 1934713408
        %v543 = vunpack.c.0.s8 %v542
        %v544 = vlaneseq
        %v545 = vshrl.u32 %v544, 7
        %v546 = vsub.s32 %v543, %v545
        %v547 = vrot.slane %v539, %v546
        %v549 = vunpack.c.l.s4 1934713408
        %v550 = vunpack.c.0.s8 %v549
        %v551 = vlaneseq
        %v552 = vshrl.u32 %v551, 7
        %v553 = vsub.s32 %v550, %v552
        %v554 = vrot.slane %v540, %v553
        %v555 = vcombine.high %v547, 0
        %v556 = vcombine.high %v554, 0
        %v557 = vcombine.low %v315, %v383
        %v559 = vunpack.c.l.s4 1983009808
        %v560 = vunpack.c.0.s8 %v559
        %v561 = vlaneseq
        %v562 = vshrl.u32 %v561, 7
        %v563 = vsub.s32 %v560, %v562
        %v564 = vrot.slane %v557, %v563
        %v565 = vcombine.low %v347, %v419
        %v567 = vunpack.c.l.s4 1983009808
        %v568 = vunpack.c.0.s8 %v567
        %v569 = vlaneseq
        %v570 = vshrl.u32 %v569, 7
        %v571 = vsub.s32 %v568, %v570
        %v572 = vrot.slane %v565, %v571
        %v573 = vcombine.low %v564, %v572
        %v575 = vunpack.c.l.s4 1934713408
        %v576 = vunpack.c.0.s8 %v575
        %v577 = vlaneseq
        %v578 = vshrl.u32 %v577, 7
        %v579 = vsub.s32 %v576, %v578
        %v580 = vrot.slane %v573, %v579
        %v581 = vcombine.low %v329, %v401
        %v583 = vunpack.c.l.s4 1983009808
        %v584 = vunpack.c.0.s8 %v583
        %v585 = vlaneseq
        %v586 = vshrl.u32 %v585, 7
        %v587 = vsub.s32 %v584, %v586
        %v588 = vrot.slane %v581, %v587
        %v589 = vcombine.low %v365, %v437
        %v591 = vunpack.c.l.s4 1983009808
        %v592 = vunpack.c.0.s8 %v591
        %v593 = vlaneseq
        %v594 = vshrl.u32 %v593, 7
        %v595 = vsub.s32 %v592, %v594
        %v596 = vrot.slane %v589, %v595
        %v597 = vcombine.low %v588, %v596
        %v599 = vunpack.c.l.s4 1934713408
        %v600 = vunpack.c.0.s8 %v599
        %v601 = vlaneseq
        %v602 = vshrl.u32 %v601, 7
        %v603 = vsub.s32 %v600, %v602
        %v604 = vrot.slane %v597, %v603
        %v605 = vcombine.low %v316, %v385
        %v607 = vunpack.c.l.s4 1983009808
        %v608 = vunpack.c.0.s8 %v607
        %v609 = vlaneseq
        %v610 = vshrl.u32 %v609, 7
        %v611 = vsub.s32 %v608, %v610
        %v612 = vrot.slane %v605, %v611
        %v613 = vcombine.low %v349, %v421
        %v615 = vunpack.c.l.s4 1983009808
        %v616 = vunpack.c.0.s8 %v615
        %v617 = vlaneseq
        %v618 = vshrl.u32 %v617, 7
        %v619 = vsub.s32 %v616, %v618
        %v620 = vrot.slane %v613, %v619
        %v621 = vcombine.low %v612, %v620
        %v622 = vcombine.high %v612, %v620
        %v624 = vunpack.c.l.s4 1934713408
        %v625 = vunpack.c.0.s8 %v624
        %v626 = vlaneseq
        %v627 = vshrl.u32 %v626, 7
        %v628 = vsub.s32 %v625, %v627
        %v629 = vrot.slane %v621, %v628
        %v631 = vunpack.c.l.s4 1934713408
        %v632 = vunpack.c.0.s8 %v631
        %v633 = vlaneseq
        %v634 = vshrl.u32 %v633, 7
        %v635 = vsub.s32 %v632, %v634
        %v636 = vrot.slane %v622, %v635
        %v637 = vcombine.high %v629, 0
        %v638 = vcombine.high %v636, 0
        %v639 = vcombine.low %v331, %v403
        %v641 = vunpack.c.l.s4 1983009808
        %v642 = vunpack.c.0.s8 %v641
        %v643 = vlaneseq
        %v644 = vshrl.u32 %v643, 7
        %v645 = vsub.s32 %v642, %v644
        %v646 = vrot.slane %v639, %v645
        %v647 = vcombine.low %v367, %v439
        %v649 = vunpack.c.l.s4 1983009808
        %v650 = vunpack.c.0.s8 %v649
        %v651 = vlaneseq
        %v652 = vshrl.u32 %v651, 7
        %v653 = vsub.s32 %v650, %v652
        %v654 = vrot.slane %v647, %v653
        %v655 = vcombine.low %v646, %v654
        %v656 = vcombine.high %v646, %v654
        %v658 = vunpack.c.l.s4 1934713408
        %v659 = vunpack.c.0.s8 %v658
        %v660 = vlaneseq
        %v661 = vshrl.u32 %v660, 7
        %v662 = vsub.s32 %v659, %v661
        %v663 = vrot.slane %v655, %v662
        %v665 = vunpack.c.l.s4 1934713408
        %v666 = vunpack.c.0.s8 %v665
        %v667 = vlaneseq
        %v668 = vshrl.u32 %v667, 7
        %v669 = vsub.s32 %v666, %v668
        %v670 = vrot.slane %v656, %v669
        %v671 = vcombine.high %v663, 0
        %v672 = vcombine.high %v670, 0
        %v675 = vunpack.c.l.s4 1983009808
        %v676 = vunpack.c.0.s8 %v675
        %v677 = vlaneseq
        %v678 = vshrl.u32 %v677, 7
        %v679 = vsub.s32 %v676, %v678
        %v680 = vrot.slane %v457, %v679
        %v681 = vcombine.high %v680, 0
        %v683 = vunpack.c.l.s4 1934713408
        %v684 = vunpack.c.0.s8 %v683
        %v685 = vlaneseq
        %v686 = vshrl.u32 %v685, 7
        %v687 = vsub.s32 %v684, %v686
        %v688 = vrot.slane %v680, %v687
        %v690 = vunpack.c.l.s4 1934713408
        %v691 = vunpack.c.0.s8 %v690
        %v692 = vlaneseq
        %v693 = vshrl.u32 %v692, 7
        %v694 = vsub.s32 %v691, %v693
        %v695 = vrot.slane %v681, %v694
        %v696 = vcombine.high %v688, 0
        %v697 = vcombine.high %v695, 0
        %v698 = vcombine.low %v317, %v387
        %v700 = vunpack.c.l.s4 1983009808
        %v701 = vunpack.c.0.s8 %v700
        %v702 = vlaneseq
        %v703 = vshrl.u32 %v702, 7
        %v704 = vsub.s32 %v701, %v703
        %v705 = vrot.slane %v698, %v704
        %v706 = vcombine.low %v351, %v423
        %v708 = vunpack.c.l.s4 1983009808
        %v709 = vunpack.c.0.s8 %v708
        %v710 = vlaneseq
        %v711 = vshrl.u32 %v710, 7
        %v712 = vsub.s32 %v709, %v711
        %v713 = vrot.slane %v706, %v712
        %v714 = vcombine.low %v705, %v713
        %v716 = vunpack.c.l.s4 1934713408
        %v717 = vunpack.c.0.s8 %v716
        %v718 = vlaneseq
        %v719 = vshrl.u32 %v718, 7
        %v720 = vsub.s32 %v717, %v719
        %v721 = vrot.slane %v714, %v720
        %v722 = vcombine.low %v333, %v405
        %v724 = vunpack.c.l.s4 1983009808
        %v725 = vunpack.c.0.s8 %v724
        %v726 = vlaneseq
        %v727 = vshrl.u32 %v726, 7
        %v728 = vsub.s32 %v725, %v727
        %v729 = vrot.slane %v722, %v728
        %v730 = vcombine.low %v369, %v441
        %v732 = vunpack.c.l.s4 1983009808
        %v733 = vunpack.c.0.s8 %v732
        %v734 = vlaneseq
        %v735 = vshrl.u32 %v734, 7
        %v736 = vsub.s32 %v733, %v735
        %v737 = vrot.slane %v730, %v736
        %v738 = vcombine.low %v729, %v737
        %v740 = vunpack.c.l.s4 1934713408
        %v741 = vunpack.c.0.s8 %v740
        %v742 = vlaneseq
        %v743 = vshrl.u32 %v742, 7
        %v744 = vsub.s32 %v741, %v743
        %v745 = vrot.slane %v738, %v744
        %v746 = vcombine.low %v318, %v389
        %v748 = vunpack.c.l.s4 1983009808
        %v749 = vunpack.c.0.s8 %v748
        %v750 = vlaneseq
        %v751 = vshrl.u32 %v750, 7
        %v752 = vsub.s32 %v749, %v751
        %v753 = vrot.slane %v746, %v752
        %v754 = vcombine.low %v353, %v425
        %v756 = vunpack.c.l.s4 1983009808
        %v757 = vunpack.c.0.s8 %v756
        %v758 = vlaneseq
        %v759 = vshrl.u32 %v758, 7
        %v760 = vsub.s32 %v757, %v759
        %v761 = vrot.slane %v754, %v760
        %v762 = vcombine.low %v753, %v761
        %v763 = vcombine.high %v753, %v761
        %v765 = vunpack.c.l.s4 1934713408
        %v766 = vunpack.c.0.s8 %v765
        %v767 = vlaneseq
        %v768 = vshrl.u32 %v767, 7
        %v769 = vsub.s32 %v766, %v768
        %v770 = vrot.slane %v762, %v769
        %v772 = vunpack.c.l.s4 1934713408
        %v773 = vunpack.c.0.s8 %v772
        %v774 = vlaneseq
        %v775 = vshrl.u32 %v774, 7
        %v776 = vsub.s32 %v773, %v775
        %v777 = vrot.slane %v763, %v776
        %v778 = vcombine.high %v770, 0
        %v779 = vcombine.high %v777, 0
        %v780 = vcombine.low %v335, %v407
        %v782 = vunpack.c.l.s4 1983009808
        %v783 = vunpack.c.0.s8 %v782
        %v784 = vlaneseq
        %v785 = vshrl.u32 %v784, 7
        %v786 = vsub.s32 %v783, %v785
        %v787 = vrot.slane %v780, %v786
        %v788 = vcombine.low %v371, %v443
        %v790 = vunpack.c.l.s4 1983009808
        %v791 = vunpack.c.0.s8 %v790
        %v792 = vlaneseq
        %v793 = vshrl.u32 %v792, 7
        %v794 = vsub.s32 %v791, %v793
        %v795 = vrot.slane %v788, %v794
        %v796 = vcombine.low %v787, %v795
        %v797 = vcombine.high %v787, %v795
        %v799 = vunpack.c.l.s4 1934713408
        %v800 = vunpack.c.0.s8 %v799
        %v801 = vlaneseq
        %v802 = vshrl.u32 %v801, 7
        %v803 = vsub.s32 %v800, %v802
        %v804 = vrot.slane %v796, %v803
        %v806 = vunpack.c.l.s4 1934713408
        %v807 = vunpack.c.0.s8 %v806
        %v808 = vlaneseq
        %v809 = vshrl.u32 %v808, 7
        %v810 = vsub.s32 %v807, %v809
        %v811 = vrot.slane %v797, %v810
        %v812 = vcombine.high %v804, 0
        %v813 = vcombine.high %v811, 0
        %v816 = vunpack.c.l.s4 1983009808
        %v817 = vunpack.c.0.s8 %v816
        %v818 = vlaneseq
        %v819 = vshrl.u32 %v818, 7
        %v820 = vsub.s32 %v817, %v819
        %v821 = vrot.slane %v461, %v820
        %v822 = vcombine.high %v821, 0
        %v824 = vunpack.c.l.s4 1934713408
        %v825 = vunpack.c.0.s8 %v824
        %v826 = vlaneseq
        %v827 = vshrl.u32 %v826, 7
        %v828 = vsub.s32 %v825, %v827
        %v829 = vrot.slane %v821, %v828
        %v831 = vunpack.c.l.s4 1934713408
        %v832 = vunpack.c.0.s8 %v831
        %v833 = vlaneseq
        %v834 = vshrl.u32 %v833, 7
        %v835 = vsub.s32 %v832, %v834
        %v836 = vrot.slane %v822, %v835
        %v837 = vcombine.high %v829, 0
        %v838 = vcombine.high %v836, 0
        %v839 = vcombine.low %v319, %v391
        %v841 = vunpack.c.l.s4 1983009808
        %v842 = vunpack.c.0.s8 %v841
        %v843 = vlaneseq
        %v844 = vshrl.u32 %v843, 7
        %v845 = vsub.s32 %v842, %v844
        %v846 = vrot.slane %v839, %v845
        %v847 = vcombine.low %v355, %v427
        %v849 = vunpack.c.l.s4 1983009808
        %v850 = vunpack.c.0.s8 %v849
        %v851 = vlaneseq
        %v852 = vshrl.u32 %v851, 7
        %v853 = vsub.s32 %v850, %v852
        %v854 = vrot.slane %v847, %v853
        %v855 = vcombine.low %v846, %v854
        %v857 = vunpack.c.l.s4 1934713408
        %v858 = vunpack.c.0.s8 %v857
        %v859 = vlaneseq
        %v860 = vshrl.u32 %v859, 7
        %v861 = vsub.s32 %v858, %v860
        %v862 = vrot.slane %v855, %v861
        %v863 = vcombine.low %v337, %v409
        %v865 = vunpack.c.l.s4 1983009808
        %v866 = vunpack.c.0.s8 %v865
        %v867 = vlaneseq
        %v868 = vshrl.u32 %v867, 7
        %v869 = vsub.s32 %v866, %v868
        %v870 = vrot.slane %v863, %v869
        %v871 = vcombine.low %v373, %v445
        %v873 = vunpack.c.l.s4 1983009808
        %v874 = vunpack.c.0.s8 %v873
        %v875 = vlaneseq
        %v876 = vshrl.u32 %v875, 7
        %v877 = vsub.s32 %v874, %v876
        %v878 = vrot.slane %v871, %v877
        %v879 = vcombine.low %v870, %v878
        %v881 = vunpack.c.l.s4 1934713408
        %v882 = vunpack.c.0.s8 %v881
        %v883 = vlaneseq
        %v884 = vshrl.u32 %v883, 7
        %v885 = vsub.s32 %v882, %v884
        %v886 = vrot.slane %v879, %v885
        %v889 = vpack.i.b16 %v522, %v488
        %v890 = vshrl.u32 %v488, 16
        %v891 = vshrl.u32 %v522, 16
        %v892 = vpack.i.b16 %v891, %v890
        %v895 = vpack.i.b16 %v530, %v496
        %v896 = vshrl.u32 %v496, 16
        %v897 = vshrl.u32 %v530, 16
        %v898 = vpack.i.b16 %v897, %v896
        %v901 = vpack.i.b16 %v529, %v495
        %v902 = vshrl.u32 %v495, 16
        %v903 = vshrl.u32 %v529, 16
        %v904 = vpack.i.b16 %v903, %v902
        %v907 = vpack.i.b16 %v531, %v497
        %v908 = vshrl.u32 %v497, 16
        %v909 = vshrl.u32 %v531, 16
        %v910 = vpack.i.b16 %v909, %v908
        %v913 = vpack.i.b16 %v604, %v580
        %v916 = vpack.i.b16 0, %v547
        %v917 = vshrl.u32 %v547, 16
        %v918 = vshrl.u32 0, 16
        %v919 = vpack.i.b16 %v918, %v917
        %v921 = vpack.i.b16 0, %v555
        %v922 = vshrl.u32 %v555, 16
        %v923 = vpack.i.b16 %v918, %v922
        %v925 = vpack.i.b16 0, %v554
        %v926 = vshrl.u32 %v554, 16
        %v927 = vpack.i.b16 %v918, %v926
        %v929 = vpack.i.b16 0, %v556
        %v930 = vshrl.u32 %v556, 16
        %v931 = vpack.i.b16 %v918, %v930
        %v933 = vpack.i.b16 0, %v455
        %v936 = vpack.i.b16 %v663, %v629
        %v937 = vshrl.u32 %v629, 16
        %v938 = vshrl.u32 %v663, 16
        %v939 = vpack.i.b16 %v938, %v937
        %v942 = vpack.i.b16 %v671, %v637
        %v943 = vshrl.u32 %v637, 16
        %v944 = vshrl.u32 %v671, 16
        %v945 = vpack.i.b16 %v944, %v943
        %v948 = vpack.i.b16 %v670, %v636
        %v949 = vshrl.u32 %v636, 16
        %v950 = vshrl.u32 %v670, 16
        %v951 = vpack.i.b16 %v950, %v949
        %v954 = vpack.i.b16 %v672, %v638
        %v955 = vshrl.u32 %v638, 16
        %v956 = vshrl.u32 %v672, 16
        %v957 = vpack.i.b16 %v956, %v955
        %v960 = vpack.i.b16 %v745, %v721
        %v962 = vpack.i.b16 0, %v688
        %v963 = vshrl.u32 %v688, 16
        %v964 = vpack.i.b16 %v918, %v963
        %v966 = vpack.i.b16 0, %v696
        %v967 = vshrl.u32 %v696, 16
        %v968 = vpack.i.b16 %v918, %v967
        %v970 = vpack.i.b16 0, %v695
        %v971 = vshrl.u32 %v695, 16
        %v972 = vpack.i.b16 %v918, %v971
        %v974 = vpack.i.b16 0, %v697
        %v975 = vshrl.u32 %v697, 16
        %v976 = vpack.i.b16 %v918, %v975
        %v978 = vpack.i.b16 0, %v459
        %v981 = vpack.i.b16 %v804, %v770
        %v982 = vshrl.u32 %v770, 16
        %v983 = vshrl.u32 %v804, 16
        %v984 = vpack.i.b16 %v983, %v982
        %v987 = vpack.i.b16 %v812, %v778
        %v988 = vshrl.u32 %v778, 16
        %v989 = vshrl.u32 %v812, 16
        %v990 = vpack.i.b16 %v989, %v988
        %v993 = vpack.i.b16 %v811, %v777
        %v994 = vshrl.u32 %v777, 16
        %v995 = vshrl.u32 %v811, 16
        %v996 = vpack.i.b16 %v995, %v994
        %v999 = vpack.i.b16 %v813, %v779
        %v1000 = vshrl.u32 %v779, 16
        %v1001 = vshrl.u32 %v813, 16
        %v1002 = vpack.i.b16 %v1001, %v1000
        %v1005 = vpack.i.b16 %v886, %v862
        %v1007 = vpack.i.b16 0, %v829
        %v1008 = vshrl.u32 %v829, 16
        %v1009 = vpack.i.b16 %v918, %v1008
        %v1011 = vpack.i.b16 0, %v837
        %v1012 = vshrl.u32 %v837, 16
        %v1013 = vpack.i.b16 %v918, %v1012
        %v1015 = vpack.i.b16 0, %v836
        %v1016 = vshrl.u32 %v836, 16
        %v1017 = vpack.i.b16 %v918, %v1016
        %v1019 = vpack.i.b16 0, %v838
        %v1020 = vshrl.u32 %v838, 16
        %v1021 = vpack.i.b16 %v918, %v1020
        %v1023 = vpack.i.b16 0, %v463
        %v1024 = vunpack.c.l.b16 %v889
        %v1025 = vunpack.c.l.b16 %v916
        %v1026 = vunpack.c.l.b16 %v892
        %v1027 = vunpack.c.l.b16 %v919
        %v1028 = vunpack.c.l.b16 %v895
        %v1029 = vunpack.c.l.b16 %v921
        %v1030 = vunpack.c.l.b16 %v898
        %v1031 = vunpack.c.l.b16 %v923
        %v1032 = vunpack.c.l.b16 %v901
        %v1033 = vunpack.c.l.b16 %v925
        %v1034 = vunpack.c.l.b16 %v904
        %v1035 = vunpack.c.l.b16 %v927
        %v1036 = vunpack.c.l.b16 %v907
        %v1037 = vunpack.c.l.b16 %v929
        %v1038 = vunpack.c.l.b16 %v910
        %v1039 = vunpack.c.l.b16 %v931
        %v1040 = vunpack.c.l.b16 %v936
        %v1041 = vunpack.c.l.b16 %v962
        %v1042 = vunpack.c.l.b16 %v939
        %v1043 = vunpack.c.l.b16 %v964
        %v1044 = vunpack.c.l.b16 %v942
        %v1045 = vunpack.c.l.b16 %v966
        %v1046 = vunpack.c.l.b16 %v945
        %v1047 = vunpack.c.l.b16 %v968
        %v1048 = vunpack.c.l.b16 %v948
        %v1049 = vunpack.c.l.b16 %v970
        %v1050 = vunpack.c.l.b16 %v951
        %v1051 = vunpack.c.l.b16 %v972
        %v1052 = vunpack.c.l.b16 %v954
        %v1053 = vunpack.c.l.b16 %v974
        %v1054 = vunpack.c.l.b16 %v957
        %v1055 = vunpack.c.l.b16 %v976
        %v1056 = vpack.c.b16 %v1025, %v1024
        %v1057 = vpack.c.b16 %v1027, %v1026
        %v1058 = vpack.c.b16 %v1029, %v1028
        %v1059 = vpack.c.b16 %v1031, %v1030
        %v1060 = vpack.c.b16 %v1033, %v1032
        %v1061 = vpack.c.b16 %v1035, %v1034
        %v1062 = vpack.c.b16 %v1037, %v1036
        %v1063 = vpack.c.b16 %v1039, %v1038
        %v1064 = vpack.c.b16 %v1041, %v1040
        %v1065 = vpack.c.b16 %v1043, %v1042
        %v1066 = vpack.c.b16 %v1045, %v1044
        %v1067 = vpack.c.b16 %v1047, %v1046
        %v1068 = vpack.c.b16 %v1049, %v1048
        %v1069 = vpack.c.b16 %v1051, %v1050
        %v1070 = vpack.c.b16 %v1053, %v1052
        %v1071 = vpack.c.b16 %v1055, %v1054
        %v1073 = vshrl.u32 %v1056, 16
        %v1075 = vshll.u32 %v1056, 16
        %v1077 = vrot.slane %v1075, 1
        %v1078 = vor.u32 %v1073, %v1077
        %v1080 = vshrl.u32 %v1057, 16
        %v1082 = vshll.u32 %v1057, 16
        %v1084 = vrot.slane %v1082, 1
        %v1085 = vor.u32 %v1080, %v1084
        %v1087 = vshrl.u32 %v1058, 16
        %v1089 = vshll.u32 %v1058, 16
        %v1091 = vrot.slane %v1089, 1
        %v1092 = vor.u32 %v1087, %v1091
        %v1094 = vshrl.u32 %v1059, 16
        %v1096 = vshll.u32 %v1059, 16
        %v1098 = vrot.slane %v1096, 1
        %v1099 = vor.u32 %v1094, %v1098
        %v1101 = vshrl.u32 %v1060, 16
        %v1103 = vshll.u32 %v1060, 16
        %v1105 = vrot.slane %v1103, 1
        %v1106 = vor.u32 %v1101, %v1105
        %v1108 = vshrl.u32 %v1061, 16
        %v1110 = vshll.u32 %v1061, 16
        %v1112 = vrot.slane %v1110, 1
        %v1113 = vor.u32 %v1108, %v1112
        %v1115 = vshrl.u32 %v1062, 16
        %v1117 = vshll.u32 %v1062, 16
        %v1119 = vrot.slane %v1117, 1
        %v1120 = vor.u32 %v1115, %v1119
        %v1122 = vshrl.u32 %v1063, 16
        %v1124 = vshll.u32 %v1063, 16
        %v1126 = vrot.slane %v1124, 1
        %v1127 = vor.u32 %v1122, %v1126
        %v1129 = vshrl.u32 %v1064, 16
        %v1131 = vshll.u32 %v1064, 16
        %v1133 = vrot.slane %v1131, 1
        %v1134 = vor.u32 %v1129, %v1133
        %v1136 = vshrl.u32 %v1065, 16
        %v1138 = vshll.u32 %v1065, 16
        %v1140 = vrot.slane %v1138, 1
        %v1141 = vor.u32 %v1136, %v1140
        %v1143 = vshrl.u32 %v1066, 16
        %v1145 = vshll.u32 %v1066, 16
        %v1147 = vrot.slane %v1145, 1
        %v1148 = vor.u32 %v1143, %v1147
        %v1150 = vshrl.u32 %v1067, 16
        %v1152 = vshll.u32 %v1067, 16
        %v1154 = vrot.slane %v1152, 1
        %v1155 = vor.u32 %v1150, %v1154
        %v1157 = vshrl.u32 %v1068, 16
        %v1159 = vshll.u32 %v1068, 16
        %v1161 = vrot.slane %v1159, 1
        %v1162 = vor.u32 %v1157, %v1161
        %v1164 = vshrl.u32 %v1069, 16
        %v1166 = vshll.u32 %v1069, 16
        %v1168 = vrot.slane %v1166, 1
        %v1169 = vor.u32 %v1164, %v1168
        %v1171 = vshrl.u32 %v1070, 16
        %v1173 = vshll.u32 %v1070, 16
        %v1175 = vrot.slane %v1173, 1
        %v1176 = vor.u32 %v1171, %v1175
        %v1178 = vshrl.u32 %v1071, 16
        %v1180 = vshll.u32 %v1071, 16
        %v1182 = vrot.slane %v1180, 1
        %v1183 = vor.u32 %v1178, %v1182
        %1184 = vrot.lane.b32.xlu0 %v1078, 8
        %v1185 = vpop.permute.xlu0 %1184
        %1186 = vrot.lane.b32.xlu0 %v1085, 8
        %v1187 = vpop.permute.xlu0 %1186
        %1188 = vrot.lane.b32.xlu0 %v1092, 8
        %v1189 = vpop.permute.xlu0 %1188
        %1190 = vrot.lane.b32.xlu0 %v1099, 8
        %v1191 = vpop.permute.xlu0 %1190
        %1192 = vrot.lane.b32.xlu0 %v1106, 8
        %v1193 = vpop.permute.xlu0 %1192
        %1194 = vrot.lane.b32.xlu0 %v1113, 8
        %v1195 = vpop.permute.xlu0 %1194
        %1196 = vrot.lane.b32.xlu0 %v1120, 8
        %v1197 = vpop.permute.xlu0 %1196
        %1198 = vrot.lane.b32.xlu0 %v1127, 8
        %v1199 = vpop.permute.xlu0 %1198
        %1200 = vrot.lane.b32.xlu0 %v1134, 8
        %v1201 = vpop.permute.xlu0 %1200
        %1202 = vrot.lane.b32.xlu0 %v1141, 8
        %v1203 = vpop.permute.xlu0 %1202
        %1204 = vrot.lane.b32.xlu0 %v1148, 8
        %v1205 = vpop.permute.xlu0 %1204
        %1206 = vrot.lane.b32.xlu0 %v1155, 8
        %v1207 = vpop.permute.xlu0 %1206
        %1208 = vrot.lane.b32.xlu0 %v1162, 8
        %v1209 = vpop.permute.xlu0 %1208
        %1210 = vrot.lane.b32.xlu0 %v1169, 8
        %v1211 = vpop.permute.xlu0 %1210
        %1212 = vrot.lane.b32.xlu0 %v1176, 8
        %v1213 = vpop.permute.xlu0 %1212
        %1214 = vrot.lane.b32.xlu0 %v1183, 8
        %v1215 = vpop.permute.xlu0 %1214
        %v1216 = vunpack.c.l.b16 %v913
        %v1217 = vunpack.c.l.b16 %v960
        %v1218 = vpack.c.b16 %v1026, %v1026
        %v1219 = vpack.c.b16 %v1028, %v1028
        %v1220 = vpack.c.b16 %v1030, %v1030
        %v1221 = vpack.c.b16 %v1032, %v1032
        %v1222 = vpack.c.b16 %v1034, %v1034
        %v1223 = vpack.c.b16 %v1036, %v1036
        %v1224 = vpack.c.b16 %v1038, %v1038
        %v1225 = vpack.c.b16 %v1216, %v1216
        %v1226 = vpack.c.b16 %v1042, %v1042
        %v1227 = vpack.c.b16 %v1044, %v1044
        %v1228 = vpack.c.b16 %v1046, %v1046
        %v1229 = vpack.c.b16 %v1048, %v1048
        %v1230 = vpack.c.b16 %v1050, %v1050
        %v1231 = vpack.c.b16 %v1052, %v1052
        %v1232 = vpack.c.b16 %v1054, %v1054
        %v1233 = vpack.c.b16 %v1217, %v1217
        %1234 = vrot.lane.b32.xlu0 %v1218, 16
        %v1235 = vpop.permute.xlu0 %1234
        %1236 = vrot.lane.b32.xlu0 %v1219, 16
        %v1237 = vpop.permute.xlu0 %1236
        %1238 = vrot.lane.b32.xlu0 %v1220, 16
        %v1239 = vpop.permute.xlu0 %1238
        %1240 = vrot.lane.b32.xlu0 %v1221, 16
        %v1241 = vpop.permute.xlu0 %1240
        %1242 = vrot.lane.b32.xlu0 %v1222, 16
        %v1243 = vpop.permute.xlu0 %1242
        %1244 = vrot.lane.b32.xlu0 %v1223, 16
        %v1245 = vpop.permute.xlu0 %1244
        %1246 = vrot.lane.b32.xlu0 %v1224, 16
        %v1247 = vpop.permute.xlu0 %1246
        %1248 = vrot.lane.b32.xlu0 %v1225, 16
        %v1249 = vpop.permute.xlu0 %1248
        %1250 = vrot.lane.b32.xlu0 %v1226, 16
        %v1251 = vpop.permute.xlu0 %1250
        %1252 = vrot.lane.b32.xlu0 %v1227, 16
        %v1253 = vpop.permute.xlu0 %1252
        %1254 = vrot.lane.b32.xlu0 %v1228, 16
        %v1255 = vpop.permute.xlu0 %1254
        %1256 = vrot.lane.b32.xlu0 %v1229, 16
        %v1257 = vpop.permute.xlu0 %1256
        %1258 = vrot.lane.b32.xlu0 %v1230, 16
        %v1259 = vpop.permute.xlu0 %1258
        %1260 = vrot.lane.b32.xlu0 %v1231, 16
        %v1261 = vpop.permute.xlu0 %1260
        %1262 = vrot.lane.b32.xlu0 %v1232, 16
        %v1263 = vpop.permute.xlu0 %1262
        %1264 = vrot.lane.b32.xlu0 %v1233, 16
        %v1265 = vpop.permute.xlu0 %1264
        %v1266 = vunpack.c.l.b16 %v933
        %v1267 = vunpack.c.l.b16 %v978
        %v1268 = vpack.c.b16 %v1266, %v1216
        %v1269 = vpack.c.b16 %v1267, %v1217
        %v1271 = vshrl.u32 %v1268, 16
        %v1273 = vshll.u32 %v1268, 16
        %v1275 = vrot.slane %v1273, 1
        %v1276 = vor.u32 %v1271, %v1275
        %v1278 = vshrl.u32 %v1269, 16
        %v1280 = vshll.u32 %v1269, 16
        %v1282 = vrot.slane %v1280, 1
        %v1283 = vor.u32 %v1278, %v1282
        %1284 = vrot.lane.b32.xlu0 %v1085, 24
        %v1285 = vpop.permute.xlu0 %1284
        %1286 = vrot.lane.b32.xlu0 %v1092, 24
        %v1287 = vpop.permute.xlu0 %1286
        %1288 = vrot.lane.b32.xlu0 %v1099, 24
        %v1289 = vpop.permute.xlu0 %1288
        %1290 = vrot.lane.b32.xlu0 %v1106, 24
        %v1291 = vpop.permute.xlu0 %1290
        %1292 = vrot.lane.b32.xlu0 %v1113, 24
        %v1293 = vpop.permute.xlu0 %1292
        %1294 = vrot.lane.b32.xlu0 %v1120, 24
        %v1295 = vpop.permute.xlu0 %1294
        %1296 = vrot.lane.b32.xlu0 %v1127, 24
        %v1297 = vpop.permute.xlu0 %1296
        %1298 = vrot.lane.b32.xlu0 %v1276, 24
        %v1299 = vpop.permute.xlu0 %1298
        %1300 = vrot.lane.b32.xlu0 %v1141, 24
        %v1301 = vpop.permute.xlu0 %1300
        %1302 = vrot.lane.b32.xlu0 %v1148, 24
        %v1303 = vpop.permute.xlu0 %1302
        %1304 = vrot.lane.b32.xlu0 %v1155, 24
        %v1305 = vpop.permute.xlu0 %1304
        %1306 = vrot.lane.b32.xlu0 %v1162, 24
        %v1307 = vpop.permute.xlu0 %1306
        %1308 = vrot.lane.b32.xlu0 %v1169, 24
        %v1309 = vpop.permute.xlu0 %1308
        %1310 = vrot.lane.b32.xlu0 %v1176, 24
        %v1311 = vpop.permute.xlu0 %1310
        %1312 = vrot.lane.b32.xlu0 %v1183, 24
        %v1313 = vpop.permute.xlu0 %1312
        %1314 = vrot.lane.b32.xlu0 %v1283, 24
        %v1315 = vpop.permute.xlu0 %1314
        %v1316 = vunpack.c.l.b16 %v981
        %v1317 = vunpack.c.l.b16 %v984
        %v1318 = vunpack.c.l.b16 %v987
        %v1319 = vunpack.c.l.b16 %v990
        %v1320 = vunpack.c.l.b16 %v993
        %v1321 = vunpack.c.l.b16 %v996
        %v1322 = vunpack.c.l.b16 %v999
        %v1323 = vunpack.c.l.b16 %v1002
        %v1324 = vpack.c.b16 %v1040, %v1040
        %v1325 = vpack.c.b16 %v1316, %v1316
        %v1326 = vpack.c.b16 %v1317, %v1317
        %v1327 = vpack.c.b16 %v1318, %v1318
        %v1328 = vpack.c.b16 %v1319, %v1319
        %v1329 = vpack.c.b16 %v1320, %v1320
        %v1330 = vpack.c.b16 %v1321, %v1321
        %v1331 = vpack.c.b16 %v1322, %v1322
        %v1332 = vpack.c.b16 %v1323, %v1323
        %1333 = vrot.lane.b32.xlu0 %v1324, 32
        %v1334 = vpop.permute.xlu0 %1333
        %1335 = vrot.lane.b32.xlu0 %v1226, 32
        %v1336 = vpop.permute.xlu0 %1335
        %1337 = vrot.lane.b32.xlu0 %v1227, 32
        %v1338 = vpop.permute.xlu0 %1337
        %1339 = vrot.lane.b32.xlu0 %v1228, 32
        %v1340 = vpop.permute.xlu0 %1339
        %1341 = vrot.lane.b32.xlu0 %v1229, 32
        %v1342 = vpop.permute.xlu0 %1341
        %1343 = vrot.lane.b32.xlu0 %v1230, 32
        %v1344 = vpop.permute.xlu0 %1343
        %1345 = vrot.lane.b32.xlu0 %v1231, 32
        %v1346 = vpop.permute.xlu0 %1345
        %1347 = vrot.lane.b32.xlu0 %v1232, 32
        %v1348 = vpop.permute.xlu0 %1347
        %1349 = vrot.lane.b32.xlu0 %v1325, 32
        %v1350 = vpop.permute.xlu0 %1349
        %1351 = vrot.lane.b32.xlu0 %v1326, 32
        %v1352 = vpop.permute.xlu0 %1351
        %1353 = vrot.lane.b32.xlu0 %v1327, 32
        %v1354 = vpop.permute.xlu0 %1353
        %1355 = vrot.lane.b32.xlu0 %v1328, 32
        %v1356 = vpop.permute.xlu0 %1355
        %1357 = vrot.lane.b32.xlu0 %v1329, 32
        %v1358 = vpop.permute.xlu0 %1357
        %1359 = vrot.lane.b32.xlu0 %v1330, 32
        %v1360 = vpop.permute.xlu0 %1359
        %1361 = vrot.lane.b32.xlu0 %v1331, 32
        %v1362 = vpop.permute.xlu0 %1361
        %1363 = vrot.lane.b32.xlu0 %v1332, 32
        %v1364 = vpop.permute.xlu0 %1363
        %v1365 = vunpack.c.l.b16 %v1007
        %v1366 = vunpack.c.l.b16 %v1009
        %v1367 = vunpack.c.l.b16 %v1011
        %v1368 = vunpack.c.l.b16 %v1013
        %v1369 = vunpack.c.l.b16 %v1015
        %v1370 = vunpack.c.l.b16 %v1017
        %v1371 = vunpack.c.l.b16 %v1019
        %v1372 = vunpack.c.l.b16 %v1021
        %v1373 = vpack.c.b16 %v1365, %v1316
        %v1374 = vpack.c.b16 %v1366, %v1317
        %v1375 = vpack.c.b16 %v1367, %v1318
        %v1376 = vpack.c.b16 %v1368, %v1319
        %v1377 = vpack.c.b16 %v1369, %v1320
        %v1378 = vpack.c.b16 %v1370, %v1321
        %v1379 = vpack.c.b16 %v1371, %v1322
        %v1380 = vpack.c.b16 %v1372, %v1323
        %v1382 = vshrl.u32 %v1373, 16
        %v1384 = vshll.u32 %v1373, 16
        %v1386 = vrot.slane %v1384, 1
        %v1387 = vor.u32 %v1382, %v1386
        %v1389 = vshrl.u32 %v1374, 16
        %v1391 = vshll.u32 %v1374, 16
        %v1393 = vrot.slane %v1391, 1
        %v1394 = vor.u32 %v1389, %v1393
        %v1396 = vshrl.u32 %v1375, 16
        %v1398 = vshll.u32 %v1375, 16
        %v1400 = vrot.slane %v1398, 1
        %v1401 = vor.u32 %v1396, %v1400
        %v1403 = vshrl.u32 %v1376, 16
        %v1405 = vshll.u32 %v1376, 16
        %v1407 = vrot.slane %v1405, 1
        %v1408 = vor.u32 %v1403, %v1407
        %v1410 = vshrl.u32 %v1377, 16
        %v1412 = vshll.u32 %v1377, 16
        %v1414 = vrot.slane %v1412, 1
        %v1415 = vor.u32 %v1410, %v1414
        %v1417 = vshrl.u32 %v1378, 16
        %v1419 = vshll.u32 %v1378, 16
        %v1421 = vrot.slane %v1419, 1
        %v1422 = vor.u32 %v1417, %v1421
        %v1424 = vshrl.u32 %v1379, 16
        %v1426 = vshll.u32 %v1379, 16
        %v1428 = vrot.slane %v1426, 1
        %v1429 = vor.u32 %v1424, %v1428
        %v1431 = vshrl.u32 %v1380, 16
        %v1433 = vshll.u32 %v1380, 16
        %v1435 = vrot.slane %v1433, 1
        %v1436 = vor.u32 %v1431, %v1435
        %1437 = vrot.lane.b32.xlu0 %v1134, 40
        %v1438 = vpop.permute.xlu0 %1437
        %1439 = vrot.lane.b32.xlu0 %v1141, 40
        %v1440 = vpop.permute.xlu0 %1439
        %1441 = vrot.lane.b32.xlu0 %v1148, 40
        %v1442 = vpop.permute.xlu0 %1441
        %1443 = vrot.lane.b32.xlu0 %v1155, 40
        %v1444 = vpop.permute.xlu0 %1443
        %1445 = vrot.lane.b32.xlu0 %v1162, 40
        %v1446 = vpop.permute.xlu0 %1445
        %1447 = vrot.lane.b32.xlu0 %v1169, 40
        %v1448 = vpop.permute.xlu0 %1447
        %1449 = vrot.lane.b32.xlu0 %v1176, 40
        %v1450 = vpop.permute.xlu0 %1449
        %1451 = vrot.lane.b32.xlu0 %v1183, 40
        %v1452 = vpop.permute.xlu0 %1451
        %1453 = vrot.lane.b32.xlu0 %v1387, 40
        %v1454 = vpop.permute.xlu0 %1453
        %1455 = vrot.lane.b32.xlu0 %v1394, 40
        %v1456 = vpop.permute.xlu0 %1455
        %1457 = vrot.lane.b32.xlu0 %v1401, 40
        %v1458 = vpop.permute.xlu0 %1457
        %1459 = vrot.lane.b32.xlu0 %v1408, 40
        %v1460 = vpop.permute.xlu0 %1459
        %1461 = vrot.lane.b32.xlu0 %v1415, 40
        %v1462 = vpop.permute.xlu0 %1461
        %1463 = vrot.lane.b32.xlu0 %v1422, 40
        %v1464 = vpop.permute.xlu0 %1463
        %1465 = vrot.lane.b32.xlu0 %v1429, 40
        %v1466 = vpop.permute.xlu0 %1465
        %1467 = vrot.lane.b32.xlu0 %v1436, 40
        %v1468 = vpop.permute.xlu0 %1467
        %v1469 = vunpack.c.l.b16 %v1005
        %v1470 = vpack.c.b16 %v1469, %v1469
        %1471 = vrot.lane.b32.xlu0 %v1226, 48
        %v1472 = vpop.permute.xlu0 %1471
        %1473 = vrot.lane.b32.xlu0 %v1227, 48
        %v1474 = vpop.permute.xlu0 %1473
        %1475 = vrot.lane.b32.xlu0 %v1228, 48
        %v1476 = vpop.permute.xlu0 %1475
        %1477 = vrot.lane.b32.xlu0 %v1229, 48
        %v1478 = vpop.permute.xlu0 %1477
        %1479 = vrot.lane.b32.xlu0 %v1230, 48
        %v1480 = vpop.permute.xlu0 %1479
        %1481 = vrot.lane.b32.xlu0 %v1231, 48
        %v1482 = vpop.permute.xlu0 %1481
        %1483 = vrot.lane.b32.xlu0 %v1232, 48
        %v1484 = vpop.permute.xlu0 %1483
        %1485 = vrot.lane.b32.xlu0 %v1233, 48
        %v1486 = vpop.permute.xlu0 %1485
        %1487 = vrot.lane.b32.xlu0 %v1326, 48
        %v1488 = vpop.permute.xlu0 %1487
        %1489 = vrot.lane.b32.xlu0 %v1327, 48
        %v1490 = vpop.permute.xlu0 %1489
        %1491 = vrot.lane.b32.xlu0 %v1328, 48
        %v1492 = vpop.permute.xlu0 %1491
        %1493 = vrot.lane.b32.xlu0 %v1329, 48
        %v1494 = vpop.permute.xlu0 %1493
        %1495 = vrot.lane.b32.xlu0 %v1330, 48
        %v1496 = vpop.permute.xlu0 %1495
        %1497 = vrot.lane.b32.xlu0 %v1331, 48
        %v1498 = vpop.permute.xlu0 %1497
        %1499 = vrot.lane.b32.xlu0 %v1332, 48
        %v1500 = vpop.permute.xlu0 %1499
        %1501 = vrot.lane.b32.xlu0 %v1470, 48
        %v1502 = vpop.permute.xlu0 %1501
        %v1503 = vunpack.c.l.b16 %v1023
        %v1504 = vpack.c.b16 %v1503, %v1469
        %v1506 = vshrl.u32 %v1504, 16
        %v1508 = vshll.u32 %v1504, 16
        %v1510 = vrot.slane %v1508, 1
        %v1511 = vor.u32 %v1506, %v1510
        %1512 = vrot.lane.b32.xlu0 %v1141, 56
        %v1513 = vpop.permute.xlu0 %1512
        %1514 = vrot.lane.b32.xlu0 %v1148, 56
        %v1515 = vpop.permute.xlu0 %1514
        %1516 = vrot.lane.b32.xlu0 %v1155, 56
        %v1517 = vpop.permute.xlu0 %1516
        %1518 = vrot.lane.b32.xlu0 %v1162, 56
        %v1519 = vpop.permute.xlu0 %1518
        %1520 = vrot.lane.b32.xlu0 %v1169, 56
        %v1521 = vpop.permute.xlu0 %1520
        %1522 = vrot.lane.b32.xlu0 %v1176, 56
        %v1523 = vpop.permute.xlu0 %1522
        %1524 = vrot.lane.b32.xlu0 %v1183, 56
        %v1525 = vpop.permute.xlu0 %1524
        %1526 = vrot.lane.b32.xlu0 %v1283, 56
        %v1527 = vpop.permute.xlu0 %1526
        %1528 = vrot.lane.b32.xlu0 %v1394, 56
        %v1529 = vpop.permute.xlu0 %1528
        %1530 = vrot.lane.b32.xlu0 %v1401, 56
        %v1531 = vpop.permute.xlu0 %1530
        %1532 = vrot.lane.b32.xlu0 %v1408, 56
        %v1533 = vpop.permute.xlu0 %1532
        %1534 = vrot.lane.b32.xlu0 %v1415, 56
        %v1535 = vpop.permute.xlu0 %1534
        %1536 = vrot.lane.b32.xlu0 %v1422, 56
        %v1537 = vpop.permute.xlu0 %1536
        %1538 = vrot.lane.b32.xlu0 %v1429, 56
        %v1539 = vpop.permute.xlu0 %1538
        %1540 = vrot.lane.b32.xlu0 %v1436, 56
        %v1541 = vpop.permute.xlu0 %1540
        %1542 = vrot.lane.b32.xlu0 %v1511, 56
        %v1543 = vpop.permute.xlu0 %1542
        %vm1544 = vcmask 64512
        %v1547 = vsel %vm1544, %v889, %v1185
        %v1550 = vsel %vm1544, %v892, %v1187
        %v1553 = vsel %vm1544, %v895, %v1189
        %v1556 = vsel %vm1544, %v898, %v1191
        %v1559 = vsel %vm1544, %v901, %v1193
        %v1562 = vsel %vm1544, %v904, %v1195
        %v1565 = vsel %vm1544, %v907, %v1197
        %v1568 = vsel %vm1544, %v910, %v1199
        %v1571 = vsel %vm1544, %v936, %v1201
        %v1574 = vsel %vm1544, %v939, %v1203
        %v1577 = vsel %vm1544, %v942, %v1205
        %v1580 = vsel %vm1544, %v945, %v1207
        %v1583 = vsel %vm1544, %v948, %v1209
        %v1586 = vsel %vm1544, %v951, %v1211
        %v1589 = vsel %vm1544, %v954, %v1213
        %v1592 = vsel %vm1544, %v957, %v1215
        %vm1593 = vcmask 130048
        %v1595 = vsel %vm1593, %v1547, %v1235
        %v1597 = vsel %vm1593, %v1550, %v1237
        %v1599 = vsel %vm1593, %v1553, %v1239
        %v1601 = vsel %vm1593, %v1556, %v1241
        %v1603 = vsel %vm1593, %v1559, %v1243
        %v1605 = vsel %vm1593, %v1562, %v1245
        %v1607 = vsel %vm1593, %v1565, %v1247
        %v1609 = vsel %vm1593, %v1568, %v1249
        %v1611 = vsel %vm1593, %v1571, %v1251
        %v1613 = vsel %vm1593, %v1574, %v1253
        %v1615 = vsel %vm1593, %v1577, %v1255
        %v1617 = vsel %vm1593, %v1580, %v1257
        %v1619 = vsel %vm1593, %v1583, %v1259
        %v1621 = vsel %vm1593, %v1586, %v1261
        %v1623 = vsel %vm1593, %v1589, %v1263
        %v1625 = vsel %vm1593, %v1592, %v1265
        %vm1626 = vcmask 195584
        %v1628 = vsel %vm1626, %v1595, %v1285
        %v1630 = vsel %vm1626, %v1597, %v1287
        %v1632 = vsel %vm1626, %v1599, %v1289
        %v1634 = vsel %vm1626, %v1601, %v1291
        %v1636 = vsel %vm1626, %v1603, %v1293
        %v1638 = vsel %vm1626, %v1605, %v1295
        %v1640 = vsel %vm1626, %v1607, %v1297
        %v1642 = vsel %vm1626, %v1609, %v1299
        %v1644 = vsel %vm1626, %v1611, %v1301
        %v1646 = vsel %vm1626, %v1613, %v1303
        %v1648 = vsel %vm1626, %v1615, %v1305
        %v1650 = vsel %vm1626, %v1617, %v1307
        %v1652 = vsel %vm1626, %v1619, %v1309
        %v1654 = vsel %vm1626, %v1621, %v1311
        %v1656 = vsel %vm1626, %v1623, %v1313
        %v1658 = vsel %vm1626, %v1625, %v1315
        %vm1659 = vcmask 261120
        %v1661 = vsel %vm1659, %v1628, %v1334
        %v1663 = vsel %vm1659, %v1630, %v1336
        %v1665 = vsel %vm1659, %v1632, %v1338
        %v1667 = vsel %vm1659, %v1634, %v1340
        %v1669 = vsel %vm1659, %v1636, %v1342
        %v1671 = vsel %vm1659, %v1638, %v1344
        %v1673 = vsel %vm1659, %v1640, %v1346
        %v1675 = vsel %vm1659, %v1642, %v1348
        %v1677 = vsel %vm1659, %v1644, %v1350
        %v1679 = vsel %vm1659, %v1646, %v1352
        %v1681 = vsel %vm1659, %v1648, %v1354
        %v1683 = vsel %vm1659, %v1650, %v1356
        %v1685 = vsel %vm1659, %v1652, %v1358
        %v1687 = vsel %vm1659, %v1654, %v1360
        %v1689 = vsel %vm1659, %v1656, %v1362
        %v1691 = vsel %vm1659, %v1658, %v1364
        %vm1692 = vcmask 326656
        %v1694 = vsel %vm1692, %v1661, %v1438
        %v1696 = vsel %vm1692, %v1663, %v1440
        %v1698 = vsel %vm1692, %v1665, %v1442
        %v1700 = vsel %vm1692, %v1667, %v1444
        %v1702 = vsel %vm1692, %v1669, %v1446
        %v1704 = vsel %vm1692, %v1671, %v1448
        %v1706 = vsel %vm1692, %v1673, %v1450
        %v1708 = vsel %vm1692, %v1675, %v1452
        %v1710 = vsel %vm1692, %v1677, %v1454
        %v1712 = vsel %vm1692, %v1679, %v1456
        %v1714 = vsel %vm1692, %v1681, %v1458
        %v1716 = vsel %vm1692, %v1683, %v1460
        %v1718 = vsel %vm1692, %v1685, %v1462
        %v1720 = vsel %vm1692, %v1687, %v1464
        %v1722 = vsel %vm1692, %v1689, %v1466
        %v1724 = vsel %vm1692, %v1691, %v1468
        %vm1725 = vcmask 392192
        %v1727 = vsel %vm1725, %v1694, %v1472
        %v1729 = vsel %vm1725, %v1696, %v1474
        %v1731 = vsel %vm1725, %v1698, %v1476
        %v1733 = vsel %vm1725, %v1700, %v1478
        %v1735 = vsel %vm1725, %v1702, %v1480
        %v1737 = vsel %vm1725, %v1704, %v1482
        %v1739 = vsel %vm1725, %v1706, %v1484
        %v1741 = vsel %vm1725, %v1708, %v1486
        %v1743 = vsel %vm1725, %v1710, %v1488
        %v1745 = vsel %vm1725, %v1712, %v1490
        %v1747 = vsel %vm1725, %v1714, %v1492
        %v1749 = vsel %vm1725, %v1716, %v1494
        %v1751 = vsel %vm1725, %v1718, %v1496
        %v1753 = vsel %vm1725, %v1720, %v1498
        %v1755 = vsel %vm1725, %v1722, %v1500
        %v1757 = vsel %vm1725, %v1724, %v1502
        %vm1758 = vcmask 457728
        %v1760 = vsel %vm1758, %v1727, %v1513
        %v1762 = vsel %vm1758, %v1729, %v1515
        %v1764 = vsel %vm1758, %v1731, %v1517
        %v1766 = vsel %vm1758, %v1733, %v1519
        %v1768 = vsel %vm1758, %v1735, %v1521
        %v1770 = vsel %vm1758, %v1737, %v1523
        %v1772 = vsel %vm1758, %v1739, %v1525
        %v1774 = vsel %vm1758, %v1741, %v1527
        %v1776 = vsel %vm1758, %v1743, %v1529
        %v1778 = vsel %vm1758, %v1745, %v1531
        %v1780 = vsel %vm1758, %v1747, %v1533
        %v1782 = vsel %vm1758, %v1749, %v1535
        %v1784 = vsel %vm1758, %v1751, %v1537
        %v1786 = vsel %vm1758, %v1753, %v1539
        %v1788 = vsel %vm1758, %v1755, %v1541
        %v1790 = vsel %vm1758, %v1757, %v1543
        %v1791 = vld [vmem:[%s2] sm:$0xf]
        %v1792 = vld [vmem:[%s2 + $0x4] sm:$0xf]
        %v1793 = vld [vmem:[%s2 + $0x8] sm:$0xf]
        %v1794 = vld [vmem:[%s2 + $0xc] sm:$0xf]
        %v1795 = vld [vmem:[%s2 + $0x10] sm:$0xf]
        %v1796 = vld [vmem:[%s2 + $0x14] sm:$0xf]
        %v1797 = vld [vmem:[%s2 + $0x18] sm:$0xf]
        %v1798 = vld [vmem:[%s2 + $0x1c] sm:$0xf]
        %v1815 = vunpack.c.l.b16 %v1760
        %v1816 = vunpack.c.l.b16 %v1762
        %v1817 = vunpack.c.l.b16 %v1764
        %v1818 = vunpack.c.l.b16 %v1766
        %v1819 = vunpack.c.l.b16 %v1768
        %v1820 = vunpack.c.l.b16 %v1770
        %v1821 = vunpack.c.l.b16 %v1772
        %v1822 = vunpack.c.l.b16 %v1774
        %v1823 = vunpack.c.l.b16 %v1776
        %v1824 = vunpack.c.l.b16 %v1778
        %v1825 = vunpack.c.l.b16 %v1780
        %v1826 = vunpack.c.l.b16 %v1782
        %v1827 = vunpack.c.l.b16 %v1784
        %v1828 = vunpack.c.l.b16 %v1786
        %v1829 = vunpack.c.l.b16 %v1788
        %v1830 = vunpack.c.l.b16 %v1790
        %v1831 = vpack.c.b16 %v1816, %v1815
        %v1832 = vpack.c.b16 %v1818, %v1817
        %v1833 = vpack.c.b16 %v1820, %v1819
        %v1834 = vpack.c.b16 %v1822, %v1821
        %v1835 = vpack.c.b16 %v1824, %v1823
        %v1836 = vpack.c.b16 %v1826, %v1825
        %v1837 = vpack.c.b16 %v1828, %v1827
        %v1838 = vpack.c.b16 %v1830, %v1829
        %v1847 = vunpack.c.l.b16 %v1791
        %v1848 = vunpack.c.l.b16 %v1792
        %v1849 = vunpack.c.l.b16 %v1793
        %v1850 = vunpack.c.l.b16 %v1794
        %v1851 = vunpack.c.l.b16 %v1795
        %v1852 = vunpack.c.l.b16 %v1796
        %v1853 = vunpack.c.l.b16 %v1797
        %v1854 = vunpack.c.l.b16 %v1798
        %v1855 = vpack.c.b16 %v1848, %v1847
        %v1856 = vpack.c.b16 %v1850, %v1849
        %v1857 = vpack.c.b16 %v1852, %v1851
        %v1858 = vpack.c.b16 %v1854, %v1853
        %vm1863 = vcmask 523264
        %v1865 = vsel %vm1863, %v1831, 0
        %v1868 = vsel %vm1863, %v1832, 0
        %v1871 = vsel %vm1863, %v1833, 0
        %v1874 = vsel %vm1863, %v1834, 0
        %v1877 = vsel %vm1863, %v1835, 0
        %v1880 = vsel %vm1863, %v1836, 0
        %v1883 = vsel %vm1863, %v1837, 0
        %v1886 = vsel %vm1863, %v1838, 0
        %1888 = vmatprep.subr.bf16.mxu0 0
        %1889 = vmatpush1.bf16.msra.mxu0 0
        %1890 = vmatprep.subr.bf16.mxu0 0
        %1891 = vmatpush1.bf16.msra.mxu0 0
        %1892 = vmatprep.subr.bf16.mxu0 0
        %1893 = vmatpush1.bf16.msra.mxu0 0
        %1894 = vmatprep.subr.bf16.mxu0 0
        %1895 = vmatpush1.bf16.msra.mxu0 0
        %1896 = vmatprep.subr.bf16.mxu0 0
        %1897 = vmatpush1.bf16.msra.mxu0 %v1858
        %1898 = vmatprep.subr.bf16.mxu0 0
        %1899 = vmatpush1.bf16.msra.mxu0 %v1857
        %1900 = vmatprep.subr.bf16.mxu0 0
        %1901 = vmatpush1.bf16.msra.mxu0 %v1856
        %1902 = vmatprep.subr.bf16.mxu0 0
        %1903 = vmatpush1.bf16.msra.mxu0 %v1855
        %1904 = vmatprep.subr.bf16.mxu0 0
        %1905 = vmatpush2.bf16.msra.mxu0 0
        %1906 = vmatprep.subr.bf16.mxu0 0
        %1907 = vmatpush2.bf16.msra.mxu0 0
        %1908 = vmatprep.subr.bf16.mxu0 0
        %1909 = vmatpush2.bf16.msra.mxu0 0
        %1910 = vmatprep.subr.bf16.mxu0 0
        %1911 = vmatpush2.bf16.msra.mxu0 0
        %1912 = vmatprep.subr.bf16.mxu0 0
        %1913 = vmatpush2.bf16.msra.mxu0 0
        %1914 = vmatprep.subr.bf16.mxu0 0
        %1915 = vmatpush2.bf16.msra.mxu0 0
        %1916 = vmatprep.subr.bf16.mxu0 0
        %1917 = vmatpush2.bf16.msra.mxu0 0
        %1918 = vmatprep.subr.bf16.mxu0 0
        %1919 = vmatpush2.bf16.msra.mxu0 0
        %1920 = vmatprep.mubr.bf16.mxu0 0
        %1921 = vmatmul.mubr.bf16.gmra.mxu0 %v1865
        %v1922 = vpop.f32.mrf.mxu0
        %v1923 = vadd.f32 0.0, %v1922
        %v1924 = vpop.f32.mrf.mxu0
        %v1925 = vpop.f32.mrf.mxu0
        %v1926 = vadd.f32 0.0, %v1925
        %v1927 = vpop.f32.mrf.mxu0
        %1928 = vmatprep.mubr.bf16.mxu0 0
        %1929 = vmatmul.mubr.bf16.gmra.mxu0 %v1868
        %v1930 = vpop.f32.mrf.mxu0
        %v1931 = vadd.f32 0.0, %v1930
        %v1932 = vpop.f32.mrf.mxu0
        %v1933 = vpop.f32.mrf.mxu0
        %v1934 = vadd.f32 0.0, %v1933
        %v1935 = vpop.f32.mrf.mxu0
        %1936 = vmatprep.mubr.bf16.mxu0 0
        %1937 = vmatmul.mubr.bf16.gmra.mxu0 %v1871
        %v1938 = vpop.f32.mrf.mxu0
        %v1939 = vadd.f32 0.0, %v1938
        %v1940 = vpop.f32.mrf.mxu0
        %v1941 = vpop.f32.mrf.mxu0
        %v1942 = vadd.f32 0.0, %v1941
        %v1943 = vpop.f32.mrf.mxu0
        %1944 = vmatprep.mubr.bf16.mxu0 0
        %1945 = vmatmul.mubr.bf16.gmra.mxu0 %v1874
        %v1946 = vpop.f32.mrf.mxu0
        %v1947 = vadd.f32 0.0, %v1946
        %v1948 = vpop.f32.mrf.mxu0
        %v1949 = vpop.f32.mrf.mxu0
        %v1950 = vadd.f32 0.0, %v1949
        %v1951 = vpop.f32.mrf.mxu0
        %1952 = vmatprep.mubr.bf16.mxu0 0
        %1953 = vmatmul.mubr.bf16.gmra.mxu0 %v1877
        %v1954 = vpop.f32.mrf.mxu0
        %v1955 = vadd.f32 0.0, %v1954
        %v1956 = vpop.f32.mrf.mxu0
        %v1957 = vpop.f32.mrf.mxu0
        %v1958 = vadd.f32 0.0, %v1957
        %v1959 = vpop.f32.mrf.mxu0
        %1960 = vmatprep.mubr.bf16.mxu0 0
        %1961 = vmatmul.mubr.bf16.gmra.mxu0 %v1880
        %v1962 = vpop.f32.mrf.mxu0
        %v1963 = vadd.f32 0.0, %v1962
        %v1964 = vpop.f32.mrf.mxu0
        %v1965 = vpop.f32.mrf.mxu0
        %v1966 = vadd.f32 0.0, %v1965
        %v1967 = vpop.f32.mrf.mxu0
        %1968 = vmatprep.mubr.bf16.mxu0 0
        %1969 = vmatmul.mubr.bf16.gmra.mxu0 %v1883
        %v1970 = vpop.f32.mrf.mxu0
        %v1971 = vadd.f32 0.0, %v1970
        %v1972 = vpop.f32.mrf.mxu0
        %v1973 = vpop.f32.mrf.mxu0
        %v1974 = vadd.f32 0.0, %v1973
        %v1975 = vpop.f32.mrf.mxu0
        %1976 = vmatprep.mubr.bf16.mxu0 0
        %1977 = vmatmul.mubr.bf16.gmra.mxu0 %v1886
        %v1978 = vpop.f32.mrf.mxu0
        %v1979 = vadd.f32 0.0, %v1978
        %v1980 = vpop.f32.mrf.mxu0
        %v1981 = vpop.f32.mrf.mxu0
        %v1982 = vadd.f32 0.0, %v1981
        %v1983 = vpop.f32.mrf.mxu0
        %1984 = vdwg.mxu0
        %v1985 = vsel %vm1863, %v1923, 0.0
        %v1986 = vsel %vm1863, %v1926, 0.0
        %v1987 = vadd.f32 %v1985, %v1986
        %v1988 = vsel %vm1863, %v1931, 0.0
        %v1989 = vadd.f32 %v1987, %v1988
        %v1990 = vsel %vm1863, %v1934, 0.0
        %v1991 = vadd.f32 %v1989, %v1990
        %v1992 = vsel %vm1863, %v1939, 0.0
        %v1993 = vadd.f32 %v1991, %v1992
        %v1994 = vsel %vm1863, %v1942, 0.0
        %v1995 = vadd.f32 %v1993, %v1994
        %v1996 = vsel %vm1863, %v1947, 0.0
        %v1997 = vadd.f32 %v1995, %v1996
        %v1998 = vsel %vm1863, %v1950, 0.0
        %v1999 = vadd.f32 %v1997, %v1998
        %v2000 = vsel %vm1863, %v1955, 0.0
        %v2001 = vadd.f32 %v1999, %v2000
        %v2002 = vsel %vm1863, %v1958, 0.0
        %v2003 = vadd.f32 %v2001, %v2002
        %v2004 = vsel %vm1863, %v1963, 0.0
        %v2005 = vadd.f32 %v2003, %v2004
        %v2006 = vsel %vm1863, %v1966, 0.0
        %v2007 = vadd.f32 %v2005, %v2006
        %v2008 = vsel %vm1863, %v1971, 0.0
        %v2009 = vadd.f32 %v2007, %v2008
        %v2010 = vsel %vm1863, %v1974, 0.0
        %v2011 = vadd.f32 %v2009, %v2010
        %v2012 = vsel %vm1863, %v1979, 0.0
        %v2013 = vadd.f32 %v2011, %v2012
        %v2014 = vsel %vm1863, %v1982, 0.0
        %v2015 = vadd.f32 %v2013, %v2014
        %v2016 = vrot.slane %v2015, 4
        %v2017 = vadd.f32 %v2015, %v2016
        %v2018 = vrot.slane %v2017, 2
        %v2019 = vadd.f32 %v2017, %v2018
        %v2020 = vrot.slane %v2019, 1
        %v2021 = vadd.f32 %v2019, %v2020
        %vm2022 = vcmask 516096
        %2023 = vst.msk [vmem:[%s272] sm:$0x1] %vm2022, %v2021
        %v2024 = vmul.f32 %v1923, %v1923
        %v2025 = vmul.f32 %v1926, %v1926
        %v2026 = vmul.f32 %v1931, %v1931
        %v2027 = vmul.f32 %v1934, %v1934
        %v2028 = vmul.f32 %v1939, %v1939
        %v2029 = vmul.f32 %v1942, %v1942
        %v2030 = vmul.f32 %v1947, %v1947
        %v2031 = vmul.f32 %v1950, %v1950
        %v2032 = vmul.f32 %v1955, %v1955
        %v2033 = vmul.f32 %v1958, %v1958
        %v2034 = vmul.f32 %v1963, %v1963
        %v2035 = vmul.f32 %v1966, %v1966
        %v2036 = vmul.f32 %v1971, %v1971
        %v2037 = vmul.f32 %v1974, %v1974
        %v2038 = vmul.f32 %v1979, %v1979
        %v2039 = vmul.f32 %v1982, %v1982
        %v2040 = vsel %vm1863, %v2024, 0.0
        %v2041 = vsel %vm1863, %v2025, 0.0
        %v2042 = vadd.f32 %v2040, %v2041
        %v2043 = vsel %vm1863, %v2026, 0.0
        %v2044 = vadd.f32 %v2042, %v2043
        %v2045 = vsel %vm1863, %v2027, 0.0
        %v2046 = vadd.f32 %v2044, %v2045
        %v2047 = vsel %vm1863, %v2028, 0.0
        %v2048 = vadd.f32 %v2046, %v2047
        %v2049 = vsel %vm1863, %v2029, 0.0
        %v2050 = vadd.f32 %v2048, %v2049
        %v2051 = vsel %vm1863, %v2030, 0.0
        %v2052 = vadd.f32 %v2050, %v2051
        %v2053 = vsel %vm1863, %v2031, 0.0
        %v2054 = vadd.f32 %v2052, %v2053
        %v2055 = vsel %vm1863, %v2032, 0.0
        %v2056 = vadd.f32 %v2054, %v2055
        %v2057 = vsel %vm1863, %v2033, 0.0
        %v2058 = vadd.f32 %v2056, %v2057
        %v2059 = vsel %vm1863, %v2034, 0.0
        %v2060 = vadd.f32 %v2058, %v2059
        %v2061 = vsel %vm1863, %v2035, 0.0
        %v2062 = vadd.f32 %v2060, %v2061
        %v2063 = vsel %vm1863, %v2036, 0.0
        %v2064 = vadd.f32 %v2062, %v2063
        %v2065 = vsel %vm1863, %v2037, 0.0
        %v2066 = vadd.f32 %v2064, %v2065
        %v2067 = vsel %vm1863, %v2038, 0.0
        %v2068 = vadd.f32 %v2066, %v2067
        %v2069 = vsel %vm1863, %v2039, 0.0
        %v2070 = vadd.f32 %v2068, %v2069
        %v2071 = vrot.slane %v2070, 4
        %v2072 = vadd.f32 %v2070, %v2071
        %v2073 = vrot.slane %v2072, 2
        %v2074 = vadd.f32 %v2072, %v2073
        %v2075 = vrot.slane %v2074, 1
        %v2076 = vadd.f32 %v2074, %v2075
        %2077 = vst.msk [vmem:[%s278] sm:$0x1] %vm2022, %v2076
        %s2078 = sand.u32 %s125, 1
        %s2079 = scalar_lea.sflag [#allocation3], %s2078
        %s2080 = sand.u32 %s125, 1
        %s2081 = scalar_lea.vmem [#allocation2], %s2080
        %s2082 = sand.u32 %s153, 1
        %s2083 = scalar_lea.sflag [#allocation5], %s2082
        %s2084 = sand.u32 %s153, 1
        %s2085 = scalar_lea.vmem [#allocation4], %s2084
        // Predicated region
        $region33: #{tpu_custom_call.1} parent=31 // pred_check
          %p2086 = pneg %p135
        $region34: #{tpu_custom_call.1} parent=31 // pred_check_branch
          %2088 = sbr.rel (%p2086) target = $region36
        $region35: #{tpu_custom_call.1} parent=31 // pred_region
          %s2090 = ssub.s32 16, 16
          %2091 = vsyncadd %s2079, %s2090
          %s2092 = smul.addr %s26, 2
          %s2093 = sadd.s32 %s27, %s2092
          %s2094 = smul.addr %s2093, 16
          %s2095 = scalar_lea.hbm %s3, %s2094
          %s2097 = sshll.u32 %s2081, 4
          %s2098 = int_to_ptr.vmem [resolvable:$true] %s2097
          %2100 = dma.vmem_to_hbm [thread:$0]  %s2098, 16, %s2095, %s2079
        $region36: #{tpu_custom_call.1} parent=31 // pred_fallthru
          _
        // Predicated region
        $region37: #{tpu_custom_call.1} parent=31 // pred_check
          %p2101 = pneg %p163
        $region38: #{tpu_custom_call.1} parent=31 // pred_check_branch
          %2103 = sbr.rel (%p2101) target = $region40
        $region39: #{tpu_custom_call.1} parent=31 // pred_region
          %s2105 = ssub.s32 16, 16
          %2106 = vsyncadd %s2083, %s2105
          %s2107 = smul.addr %s26, 2
          %s2108 = sadd.s32 %s27, %s2107
          %s2109 = smul.addr %s2108, 16
          %s2110 = scalar_lea.hbm %s4, %s2109
          %s2112 = sshll.u32 %s2085, 4
          %s2113 = int_to_ptr.vmem [resolvable:$true] %s2112
          %2115 = dma.vmem_to_hbm [thread:$0]  %s2113, 16, %s2110, %s2083
        $region40: #{tpu_custom_call.1} parent=31 // pred_fallthru
          _
      $region32: #{tpu_custom_call.1} parent=5 // pred_fallthru
        _
      %p2116 = scmp.le.s32.totalorder 2, %s17
      // Predicated region
      $region41: #{tpu_custom_call.1} parent=5 // pred_check
        %p2117 = pneg %p2116
      $region42: #{tpu_custom_call.1} parent=5 // pred_check_branch
        %2119 = sbr.rel (%p2117) target = $region44
      $region43: #{tpu_custom_call.1} parent=5 // pred_region
        %s2120 = ssub.s32 %s17, 2
        // Predicated region
        $region45: #{tpu_custom_call.1} parent=43 // pred_check
          %p2121 = pneg %p141
        $region46: #{tpu_custom_call.1} parent=43 // pred_check_branch
          %2123 = sbr.rel (%p2121) target = $region48
        $region47: #{tpu_custom_call.1} parent=43 // pred_region
          %s2124 = sand.u32 %s126, 1
          %s2125 = scalar_lea.sflag [#allocation3], %s2124
          %s2126 = sand.u32 %s126, 1
          %s2127 = scalar_lea.vmem [#allocation2], %s2126
          %2128 = dma.done %s2125, 16
        $region48: #{tpu_custom_call.1} parent=43 // pred_fallthru
          _
        // Predicated region
        $region49: #{tpu_custom_call.1} parent=43 // pred_check
          %p2129 = pneg %p169
        $region50: #{tpu_custom_call.1} parent=43 // pred_check_branch
          %2131 = sbr.rel (%p2129) target = $region52
        $region51: #{tpu_custom_call.1} parent=43 // pred_region
          %s2132 = sand.u32 %s154, 1
          %s2133 = scalar_lea.sflag [#allocation5], %s2132
          %s2134 = sand.u32 %s154, 1
          %s2135 = scalar_lea.vmem [#allocation4], %s2134
          %2136 = dma.done %s2133, 16
        $region52: #{tpu_custom_call.1} parent=43 // pred_fallthru
          _
      $region44: #{tpu_custom_call.1} parent=5 // pred_fallthru
        _
    $region6: #{tpu_custom_call.1} parent=1 // loop_footer
      %s21 = sadd.s32 1, %s17
    $region7: #{tpu_custom_call.1} parent=1 // loop_footer_branch
      %16 = sbr.rel target = $region3
    $region8: #{tpu_custom_call.1} parent=1 // loop_exit
      _
    %2137 = vsyncpa [#allocation3], 1
    %s2138 = scalar_lea.sflag [#allocation3], 1
    %2139 = vsyncpa %s2138, 1
    %2140 = vsyncpa [#allocation5], 1
    %s2141 = scalar_lea.sflag [#allocation5], 1
    %2142 = vsyncpa %s2141, 1

</llo_original>
